<compile_context>
chip_gen: v7x
topology: tpu7x:2x2x1
jax: 0.10.0
libtpu: 0.0.40
codegen_flags: <defaults>
</compile_context>

<pallas_src>
import math
import functools

import jax
import jax.numpy as jnp
from jax import lax
from jax.experimental import pallas as pl
from jax.experimental.pallas import tpu as pltpu

LOG2 = math.log(2.0)


# ----------------------------------------------------------------------------
# Pallas kernel: one SchNetInteraction (CFConv + f2out + dense + residual)
# per grid step; grid = (batch_chunk ["parallel"], interaction ["arbitrary"]).
# The running atom representation lives in the resident output block.
# ----------------------------------------------------------------------------
def _interaction_kernel(n_nbh,
                        x_ref, fij_ref, cm_ref, nbr_ref,
                        w1_ref, b1_ref, w2_ref, b2_ref, win_ref,
                        wf2_ref, bf2_ref, wd_ref, bd_ref,
                        out_ref):
    t = pl.program_id(1)
    bf16 = jnp.bfloat16

    # Initialize the resident state from the embedding at the first
    # interaction of this batch chunk.
    @pl.when(t == 0)
    def _():
        out_ref[...] = x_ref[...]

    x = out_ref[...]                       # (R, A)  running representation
    fij = fij_ref[...]                     # (P, G)  expanded distances
    cm = cm_ref[...]                       # (P, 1)  cutoff * pairwise mask
    nbr = nbr_ref[...]                     # (P, 1)  chunk-local neighbor rows

    R = x.shape[0]
    P = fij.shape[0]
    F = w1_ref.shape[2]

    # per-interaction weights (bf16 for the MXU, f32 biases)
    w1 = w1_ref[0].astype(bf16)            # (G, F)
    w2 = w2_ref[0].astype(bf16)            # (F, F)
    win = win_ref[0].astype(bf16)          # (A, F)
    wf2 = wf2_ref[0].astype(bf16)          # (F, A)
    wd = wd_ref[0].astype(bf16)            # (A, A)
    b1 = b1_ref[0]                         # (1, F)
    b2 = b2_ref[0]
    bf2 = bf2_ref[0]
    bd = bd_ref[0]

    # ---- filter-generating network: Dense(G->F, ssp) ; Dense(F->F) --------
    h = jnp.dot(fij.astype(bf16), w1, preferred_element_type=jnp.float32) + b1
    h = jax.nn.softplus(h) - LOG2
    W = jnp.dot(h.astype(bf16), w2, preferred_element_type=jnp.float32) + b2

    # ---- CFConv: in2f, neighbor gather, filter, masked aggregate ----------
    y = jnp.dot(x.astype(bf16), win, preferred_element_type=jnp.float32)   # (R, F)

    # torch.gather equivalent: bf16 one-hot matmul on the MXU.
    # TODO(synk): for large N_a use a scalar-prefetched DMA gather instead.
    onehot = (nbr == lax.broadcasted_iota(jnp.int32, (P, R), 1))
    onehot = onehot.astype(jnp.float32).astype(bf16)                       # (P, R)
    y_nb = jnp.dot(onehot, y.astype(bf16),
                   preferred_element_type=jnp.float32)                     # (P, F)

    # sum1 = y * W, then Aggregate(axis=2) with merged cutoff*mask factor.
    s = y_nb * (W * cm)                                                    # (P, F)
    agg = jnp.sum(s.reshape(R, n_nbh, F), axis=1)                          # (R, F)

    # ---- f2out (Dense + ssp) and dense (Dense, no activation) -------------
    v = jnp.dot(agg.astype(bf16), wf2, preferred_element_type=jnp.float32) + bf2
    v = jax.nn.softplus(v) - LOG2
    v = jnp.dot(v.astype(bf16), wd, preferred_element_type=jnp.float32) + bd

    # ---- residual state update (lane-dense store: A == 128) ---------------
    out_ref[...] = (x + v).astype(out_ref.dtype)


# ----------------------------------------------------------------------------
# Wrapper: flatten/fold batch, merge cutoff+mask, rebase neighbor indices,
# stack all interactions into one pallas_call.
# ----------------------------------------------------------------------------
def schnet_interactions(x, f_ij, r_ij, neighbors, neighbor_mask, params, cutoff):
    B, N_a, A = x.shape
    _, _, N_nbh, G = f_ij.shape
    T, _, F = params["w1t"].shape

    # Fold batch into rows; keep >= 2 "parallel" batch chunks when possible so
    # both v7x TensorCores get work (no-op on single-TC v5e/v6e).
    NB = 2 if (B % 2 == 0 and B >= 2) else 1
    CB = B // NB                    # batch elements folded per chunk
    R = CB * N_a                    # atom rows per chunk
    P = R * N_nbh                   # pair rows per chunk

    x_flat = x.reshape(B * N_a, A).astype(jnp.float32)
    fij_flat = f_ij.reshape(B * N_a * N_nbh, G).astype(jnp.float32)

    # merged cutoff * pairwise-mask factor (single narrow input stream)
    cm = neighbor_mask.astype(jnp.float32) * (r_ij <= cutoff).astype(jnp.float32)
    cm_flat = cm.reshape(B * N_a * N_nbh, 1)

    # chunk-local row indices for the neighbor gather
    b_local = (jnp.arange(B) % CB)[:, None, None]
    nbr_flat = (neighbors + b_local * N_a).reshape(B * N_a * N_nbh, 1)
    nbr_flat = nbr_flat.astype(jnp.int32)

    data_map = lambda nb, t: (nb, 0)      # per-chunk, constant over interactions
    wgt_map = lambda nb, t: (t, 0, 0)     # per-interaction weight slab

    in_specs = [
        pl.BlockSpec((R, A), data_map),       # x (initial embedding)
        pl.BlockSpec((P, G), data_map),       # f_ij
        pl.BlockSpec((P, 1), data_map),       # cutoff * pairwise mask
        pl.BlockSpec((P, 1), data_map),       # neighbors (chunk-local)
        pl.BlockSpec((1, G, F), wgt_map),     # filter W1^T
        pl.BlockSpec((1, 1, F), wgt_map),     # filter b1
        pl.BlockSpec((1, F, F), wgt_map),     # filter W2^T
        pl.BlockSpec((1, 1, F), wgt_map),     # filter b2
        pl.BlockSpec((1, A, F), wgt_map),     # in2f W^T (no bias)
        pl.BlockSpec((1, F, A), wgt_map),     # f2out W^T
        pl.BlockSpec((1, 1, A), wgt_map),     # f2out b
        pl.BlockSpec((1, A, A), wgt_map),     # dense W^T
        pl.BlockSpec((1, 1, A), wgt_map),     # dense b
    ]
    out_spec = pl.BlockSpec((R, A), data_map)  # resident across interaction axis

    kernel = functools.partial(_interaction_kernel, N_nbh)

    out = pl.pallas_call(
        kernel,
        out_shape=jax.ShapeDtypeStruct((B * N_a, A), jnp.float32),
        grid_spec=pltpu.PrefetchScalarGridSpec(
            num_scalar_prefetch=0,
            grid=(NB, T),
            in_specs=in_specs,
            out_specs=out_spec),
        compiler_params=pltpu.CompilerParams(
            dimension_semantics=("parallel", "arbitrary"),
            vmem_limit_bytes=32 * 1024 * 1024),
    )(x_flat, fij_flat, cm_flat, nbr_flat,
      params["w1t"], params["b1"], params["w2t"], params["b2"],
      params["win_t"], params["wf2t"], params["bf2"],
      params["wdt"], params["bd"])

    return out.reshape(B, N_a, A)


# ----------------------------------------------------------------------------
# Plain-JAX glue: AtomDistances, GaussianSmearing (SchNet front-end)
# ----------------------------------------------------------------------------
def atom_distances(positions, neighbors, cell, cell_offset, neighbor_mask):
    B = positions.shape[0]
    b_idx = jnp.arange(B)[:, None, None]
    pos_xyz = positions[b_idx, neighbors]                  # (B, A, N, 3)
    dist_vec = pos_xyz - positions[:, :, None, :]
    offsets = jnp.einsum("band,bde->bane",
                         cell_offset.astype(positions.dtype), cell)
    dist_vec = dist_vec + offsets
    distances = jnp.sqrt(jnp.sum(dist_vec * dist_vec, axis=-1))
    return jnp.where(neighbor_mask != 0, distances, 0.0)


def gaussian_smearing(distances, offsets, widths):
    coeff = -0.5 / widths ** 2
    diff = distances[..., None] - offsets
    return jnp.exp(coeff * diff * diff)


# ----------------------------------------------------------------------------
# Deterministic parameter init (stacked along the interaction axis)
# ----------------------------------------------------------------------------
def init_params(key, n_interactions, n_atom_basis, n_filters, n_gaussians, max_z):
    k_emb, key = jax.random.split(key)
    emb = jax.random.normal(k_emb, (max_z, n_atom_basis), jnp.float32) * 0.1
    emb = emb.at[0].set(0.0)                    # padding_idx=0

    T, A, F, G = n_interactions, n_atom_basis, n_filters, n_gaussians

    def lin(k, fan_in, shape):
        return jax.random.normal(k, shape, jnp.float32) / math.sqrt(fan_in)

    def bias(k, shape):
        return jax.random.normal(k, shape, jnp.float32) * 0.01

    ks = jax.random.split(key, 9)
    params = dict(
        w1t=lin(ks[0], G, (T, G, F)),
        b1=bias(ks[1], (T, 1, F)),
        w2t=lin(ks[2], F, (T, F, F)),
        b2=bias(ks[3], (T, 1, F)),
        win_t=lin(ks[4], A, (T, A, F)),
        wf2t=lin(ks[5], F, (T, F, A)),
        bf2=bias(ks[6], (T, 1, A)),
        wdt=lin(ks[7], A, (T, A, A)),
        bd=bias(ks[8], (T, 1, A)),
    )
    return emb, params


# ----------------------------------------------------------------------------
# Pure-JAX reference.  mm_dtype=bfloat16 mirrors the kernel's MXU casts
# exactly (tight check); mm_dtype=float32 is the full-precision reference.
# ----------------------------------------------------------------------------
def schnet_interactions_ref(x, f_ij, r_ij, neighbors, neighbor_mask, params,
                            cutoff, mm_dtype=jnp.float32):
    f32 = jnp.float32
    B = x.shape[0]
    T = params["w1t"].shape[0]

    def mm(a, b):
        return lax.dot_general(a.astype(mm_dtype), b.astype(mm_dtype),
                               (((a.ndim - 1,), (0,)), ((), ())),
                               preferred_element_type=f32)

    cm = (neighbor_mask.astype(f32) * (r_ij <= cutoff).astype(f32))[..., None]
    b_idx = jnp.arange(B)[:, None, None]
    x = x.astype(f32)
    for t in range(T):
        h = jax.nn.softplus(mm(f_ij, params["w1t"][t]) + params["b1"][t, 0]) - LOG2
        W = mm(h, params["w2t"][t]) + params["b2"][t, 0]
        y = mm(x, params["win_t"][t])
        y = y.astype(mm_dtype).astype(f32)          # matches in-kernel gather dtype
        y_nb = y[b_idx, neighbors]                  # (B, N_a, N_nbh, F)
        s = y_nb * (W * cm)
        agg = jnp.sum(s, axis=2)
        v = jax.nn.softplus(mm(agg, params["wf2t"][t]) + params["bf2"][t, 0]) - LOG2
        v = mm(v, params["wdt"][t]) + params["bd"][t, 0]
        x = x + v
    return x


if __name__ == "__main__":
    # small shapes consistent with the module (SchNet default feature width 128)
    B, N_a, N_nbh = 4, 8, 8
    n_atom_basis = 128
    n_filters = 128
    n_gaussians = 25
    n_interactions = 3
    max_z = 20
    cutoff = 5.0

    key = jax.random.PRNGKey(0)
    k_z, k_pos, k_nbr, k_mask, k_par = jax.random.split(key, 5)

    atomic_numbers = jax.random.randint(k_z, (B, N_a), 1, max_z)
    atomic_numbers = atomic_numbers.at[:, -1].set(0)            # padded atom
    positions = jax.random.uniform(k_pos, (B, N_a, 3), jnp.float32) * 4.0
    cell = jnp.tile(jnp.eye(3, dtype=jnp.float32)[None] * 10.0, (B, 1, 1))
    cell_offset = jnp.zeros((B, N_a, N_nbh, 3), jnp.float32)
    neighbors = jax.random.randint(k_nbr, (B, N_a, N_nbh), 0, N_a)
    neighbor_mask = (jax.random.uniform(k_mask, (B, N_a, N_nbh)) > 0.2
                     ).astype(jnp.float32)

    emb, params = init_params(k_par, n_interactions, n_atom_basis,
                              n_filters, n_gaussians, max_z)

    # SchNet front-end (plain JAX): embedding, distances, Gaussian expansion
    x0 = emb[atomic_numbers]
    r_ij = atom_distances(positions, neighbors, cell, cell_offset, neighbor_mask)
    g_off = jnp.linspace(0.0, cutoff, n_gaussians)
    g_w = (g_off[1] - g_off[0]) * jnp.ones_like(g_off)
    f_ij = gaussian_smearing(r_ij, g_off, g_w)

    out = schnet_interactions(x0, f_ij, r_ij, neighbors, neighbor_mask,
                              params, cutoff)
    out = jax.block_until_ready(out)

    # tight check: same bf16 MXU casts as the kernel -> validates mechanics
    ref_bf16 = schnet_interactions_ref(x0, f_ij, r_ij, neighbors, neighbor_mask,
                                       params, cutoff, mm_dtype=jnp.bfloat16)
    err_tight = float(jnp.max(jnp.abs(out - ref_bf16)))
    assert err_tight < 1e-3, f"kernel vs bf16-matched reference: {err_tight}"

    # loose check: full-f32 reference (bounds bf16 operand-rounding error only)
    ref_f32 = schnet_interactions_ref(x0, f_ij, r_ij, neighbors, neighbor_mask,
                                      params, cutoff, mm_dtype=jnp.float32)
    err_f32 = float(jnp.max(jnp.abs(out - ref_f32)))
    assert err_f32 < 3e-2, f"kernel vs f32 reference: {err_f32}"

    print("KERNEL_OK")
</pallas_src>

<mosaic_0001>
module attributes {stable_mosaic.version = 11 : i64} {
  func.func @_interaction_kernel(%arg0: i32, %arg1: i32, %arg2: memref<16x128xf32, #tpu.memory_space<vmem>>, %arg3: memref<128x25xf32, #tpu.memory_space<vmem>>, %arg4: memref<128x1xf32, #tpu.memory_space<vmem>>, %arg5: memref<128x1xi32, #tpu.memory_space<vmem>>, %arg6: memref<1x25x128xf32, #tpu.memory_space<vmem>>, %arg7: memref<1x1x128xf32, #tpu.memory_space<vmem>>, %arg8: memref<1x128x128xf32, #tpu.memory_space<vmem>>, %arg9: memref<1x1x128xf32, #tpu.memory_space<vmem>>, %arg10: memref<1x128x128xf32, #tpu.memory_space<vmem>>, %arg11: memref<1x128x128xf32, #tpu.memory_space<vmem>>, %arg12: memref<1x1x128xf32, #tpu.memory_space<vmem>>, %arg13: memref<1x128x128xf32, #tpu.memory_space<vmem>>, %arg14: memref<1x1x128xf32, #tpu.memory_space<vmem>>, %arg15: memref<16x128xf32, #tpu.memory_space<vmem>>) attributes {dimension_semantics = [#tpu.dimension_semantics<parallel>, #tpu.dimension_semantics<arbitrary>], iteration_bounds = array<i64: 2, 3>, scalar_prefetch = 0 : i64, scratch_operands = 0 : i64, tpu.core_type = #tpu.core_type<tc>, window_params = [{transform_indices = @transform_0, window_bounds = array<i64: 16, 128>}, {transform_indices = @transform_1, window_bounds = array<i64: 128, 25>}, {transform_indices = @transform_2, window_bounds = array<i64: 128, 1>}, {transform_indices = @transform_3, window_bounds = array<i64: 128, 1>}, {transform_indices = @transform_4, window_bounds = array<i64: 1, 25, 128>}, {transform_indices = @transform_5, window_bounds = array<i64: 1, 1, 128>}, {transform_indices = @transform_6, window_bounds = array<i64: 1, 128, 128>}, {transform_indices = @transform_7, window_bounds = array<i64: 1, 1, 128>}, {transform_indices = @transform_8, window_bounds = array<i64: 1, 128, 128>}, {transform_indices = @transform_9, window_bounds = array<i64: 1, 128, 128>}, {transform_indices = @transform_10, window_bounds = array<i64: 1, 1, 128>}, {transform_indices = @transform_11, window_bounds = array<i64: 1, 128, 128>}, {transform_indices = @transform_12, window_bounds = array<i64: 1, 1, 128>}, {transform_indices = @transform_13, window_bounds = array<i64: 16, 128>}]} {
    %c0_i32 = arith.constant 0 : i32
    %0 = arith.cmpi eq, %arg1, %c0_i32 : i32
    %1 = arith.extui %0 : i1 to i32
    %c0_i32_0 = arith.constant 0 : i32
    %2 = arith.cmpi ne, %1, %c0_i32_0 : i32
    scf.if %2 {
      %c0_49 = arith.constant 0 : index
      %c0_50 = arith.constant 0 : index
      %95 = vector.load %arg2[%c0_49, %c0_50] : memref<16x128xf32, #tpu.memory_space<vmem>>, vector<16x128xf32>
      %c0_51 = arith.constant 0 : index
      %c0_52 = arith.constant 0 : index
      %96 = vector.load %arg15[%c0_51, %c0_52] : memref<16x128xf32, #tpu.memory_space<vmem>>, vector<16x128xf32>
      tpu.vector_store %arg15[%c0_51, %c0_52], %95 {strides = array<i32>} : memref<16x128xf32, #tpu.memory_space<vmem>>, vector<16x128xf32>,
    } else {
    }
    %c0 = arith.constant 0 : index
    %c0_1 = arith.constant 0 : index
    %3 = vector.load %arg15[%c0, %c0_1] : memref<16x128xf32, #tpu.memory_space<vmem>>, vector<16x128xf32>
    %c0_2 = arith.constant 0 : index
    %c0_3 = arith.constant 0 : index
    %4 = vector.load %arg3[%c0_2, %c0_3] : memref<128x25xf32, #tpu.memory_space<vmem>>, vector<128x25xf32>
    %c0_4 = arith.constant 0 : index
    %c0_5 = arith.constant 0 : index
    %5 = vector.load %arg4[%c0_4, %c0_5] : memref<128x1xf32, #tpu.memory_space<vmem>>, vector<128x1xf32>
    %c0_6 = arith.constant 0 : index
    %c0_7 = arith.constant 0 : index
    %6 = vector.load %arg5[%c0_6, %c0_7] : memref<128x1xi32, #tpu.memory_space<vmem>>, vector<128x1xi32>
    %c0_8 = arith.constant 0 : index
    %c0_9 = arith.constant 0 : index
    %c0_10 = arith.constant 0 : index
    %7 = vector.load %arg6[%c0_8, %c0_9, %c0_10] : memref<1x25x128xf32, #tpu.memory_space<vmem>>, vector<1x25x128xf32>
    %8 = vector.shape_cast %7 : vector<1x25x128xf32> to vector<25x128xf32>
    %9 = arith.truncf %8 : vector<25x128xf32> to vector<25x128xbf16>
    %c0_11 = arith.constant 0 : index
    %c0_12 = arith.constant 0 : index
    %c0_13 = arith.constant 0 : index
    %10 = vector.load %arg8[%c0_11, %c0_12, %c0_13] : memref<1x128x128xf32, #tpu.memory_space<vmem>>, vector<1x128x128xf32>
    %11 = vector.shape_cast %10 : vector<1x128x128xf32> to vector<128x128xf32>
    %12 = arith.truncf %11 : vector<128x128xf32> to vector<128x128xbf16>
    %c0_14 = arith.constant 0 : index
    %c0_15 = arith.constant 0 : index
    %c0_16 = arith.constant 0 : index
    %13 = vector.load %arg10[%c0_14, %c0_15, %c0_16] : memref<1x128x128xf32, #tpu.memory_space<vmem>>, vector<1x128x128xf32>
    %14 = vector.shape_cast %13 : vector<1x128x128xf32> to vector<128x128xf32>
    %15 = arith.truncf %14 : vector<128x128xf32> to vector<128x128xbf16>
    %c0_17 = arith.constant 0 : index
    %c0_18 = arith.constant 0 : index
    %c0_19 = arith.constant 0 : index
    %16 = vector.load %arg11[%c0_17, %c0_18, %c0_19] : memref<1x128x128xf32, #tpu.memory_space<vmem>>, vector<1x128x128xf32>
    %17 = vector.shape_cast %16 : vector<1x128x128xf32> to vector<128x128xf32>
    %18 = arith.truncf %17 : vector<128x128xf32> to vector<128x128xbf16>
    %c0_20 = arith.constant 0 : index
    %c0_21 = arith.constant 0 : index
    %c0_22 = arith.constant 0 : index
    %19 = vector.load %arg13[%c0_20, %c0_21, %c0_22] : memref<1x128x128xf32, #tpu.memory_space<vmem>>, vector<1x128x128xf32>
    %20 = vector.shape_cast %19 : vector<1x128x128xf32> to vector<128x128xf32>
    %21 = arith.truncf %20 : vector<128x128xf32> to vector<128x128xbf16>
    %c0_23 = arith.constant 0 : index
    %c0_24 = arith.constant 0 : index
    %c0_25 = arith.constant 0 : index
    %22 = vector.load %arg7[%c0_23, %c0_24, %c0_25] : memref<1x1x128xf32, #tpu.memory_space<vmem>>, vector<1x1x128xf32>
    %23 = vector.shape_cast %22 : vector<1x1x128xf32> to vector<1x128xf32>
    %c0_26 = arith.constant 0 : index
    %c0_27 = arith.constant 0 : index
    %c0_28 = arith.constant 0 : index
    %24 = vector.load %arg9[%c0_26, %c0_27, %c0_28] : memref<1x1x128xf32, #tpu.memory_space<vmem>>, vector<1x1x128xf32>
    %25 = vector.shape_cast %24 : vector<1x1x128xf32> to vector<1x128xf32>
    %c0_29 = arith.constant 0 : index
    %c0_30 = arith.constant 0 : index
    %c0_31 = arith.constant 0 : index
    %26 = vector.load %arg12[%c0_29, %c0_30, %c0_31] : memref<1x1x128xf32, #tpu.memory_space<vmem>>, vector<1x1x128xf32>
    %27 = vector.shape_cast %26 : vector<1x1x128xf32> to vector<1x128xf32>
    %c0_32 = arith.constant 0 : index
    %c0_33 = arith.constant 0 : index
    %c0_34 = arith.constant 0 : index
    %28 = vector.load %arg14[%c0_32, %c0_33, %c0_34] : memref<1x1x128xf32, #tpu.memory_space<vmem>>, vector<1x1x128xf32>
    %29 = vector.shape_cast %28 : vector<1x1x128xf32> to vector<1x128xf32>
    %30 = arith.truncf %4 : vector<128x25xf32> to vector<128x25xbf16>
    %cst = arith.constant dense<0.000000e+00> : vector<128x128xf32>
    %31 = tpu.matmul %30, %9, %cst {dimension_numbers = #tpu.dot_dimension_numbers<[1], [0], [0], [1], [0, 0, 1, 1], [], []>} : vector<128x25xbf16>, vector<25x128xbf16>, vector<128x128xf32> -> vector<128x128xf32>
    %32 = vector.broadcast %23 : vector<1x128xf32> to vector<128x128xf32>
    %33 = arith.addf %31, %32 : vector<128x128xf32>
    %cst_35 = arith.constant 0.000000e+00 : f32
    %34 = vector.broadcast %cst_35 : f32 to vector<128x128xf32>
    %35 = arith.maximumf %33, %34 : vector<128x128xf32>
    %36 = vector.broadcast %cst_35 : f32 to vector<128x128xf32>
    %37 = arith.subf %33, %36 : vector<128x128xf32>
    %38 = arith.cmpf one, %37, %37 : vector<128x128xf32>
    %39 = vector.broadcast %cst_35 : f32 to vector<128x128xf32>
    %40 = arith.addf %33, %39 : vector<128x128xf32>
    %41 = math.absf %37 : vector<128x128xf32>
    %cst_36 = arith.constant 0.000000e+00 : f32
    %42 = vector.broadcast %cst_36 : f32 to vector<128x128xf32>
    %43 = arith.subf %42, %41 : vector<128x128xf32>
    %44 = math.exp %43 : vector<128x128xf32>
    %45 = math.log1p %44 : vector<128x128xf32>
    %46 = arith.addf %35, %45 : vector<128x128xf32>
    %47 = arith.select %38, %40, %46 : vector<128x128xi1>, vector<128x128xf32>
    %cst_37 = arith.constant 0.693147182 : f32
    %48 = vector.broadcast %cst_37 : f32 to vector<128x128xf32>
    %49 = arith.subf %47, %48 : vector<128x128xf32>
    %50 = arith.truncf %49 : vector<128x128xf32> to vector<128x128xbf16>
    %cst_38 = arith.constant dense<0.000000e+00> : vector<128x128xf32>
    %51 = tpu.matmul %50, %12, %cst_38 {dimension_numbers = #tpu.dot_dimension_numbers<[1], [0], [0], [1], [0, 0, 1, 1], [], []>} : vector<128x128xbf16>, vector<128x128xbf16>, vector<128x128xf32> -> vector<128x128xf32>
    %52 = vector.broadcast %25 : vector<1x128xf32> to vector<128x128xf32>
    %53 = arith.addf %51, %52 : vector<128x128xf32>
    %54 = arith.truncf %3 : vector<16x128xf32> to vector<16x128xbf16>
    %cst_39 = arith.constant dense<0.000000e+00> : vector<16x128xf32>
    %55 = tpu.matmul %54, %15, %cst_39 {dimension_numbers = #tpu.dot_dimension_numbers<[1], [0], [0], [1], [0, 0, 1, 1], [], []>} : vector<16x128xbf16>, vector<128x128xbf16>, vector<16x128xf32> -> vector<16x128xf32>
    %56 = tpu.iota {dimensions = array<i32: 1>} : vector<128x16xi32>
    %57 = vector.broadcast %6 : vector<128x1xi32> to vector<128x16xi32>
    %58 = arith.cmpi eq, %57, %56 : vector<128x16xi32>
    %59 = arith.extui %58 : vector<128x16xi1> to vector<128x16xi32>
    %60 = arith.sitofp %59 : vector<128x16xi32> to vector<128x16xf32>
    %61 = arith.truncf %60 : vector<128x16xf32> to vector<128x16xbf16>
    %62 = arith.truncf %55 : vector<16x128xf32> to vector<16x128xbf16>
    %cst_40 = arith.constant dense<0.000000e+00> : vector<128x128xf32>
    %63 = tpu.matmul %61, %62, %cst_40 {dimension_numbers = #tpu.dot_dimension_numbers<[1], [0], [0], [1], [0, 0, 1, 1], [], []>} : vector<128x16xbf16>, vector<16x128xbf16>, vector<128x128xf32> -> vector<128x128xf32>
    %64 = vector.broadcast %5 : vector<128x1xf32> to vector<128x128xf32>
    %65 = arith.mulf %53, %64 : vector<128x128xf32>
    %66 = arith.mulf %63, %65 : vector<128x128xf32>
    %67 = vector.shape_cast %66 : vector<128x128xf32> to vector<16x8x128xf32>
    %cst_41 = arith.constant dense<0.000000e+00> : vector<16x128xf32>
    %68 = vector.multi_reduction <add>, %67, %cst_41 [1] : vector<16x8x128xf32> to vector<16x128xf32>
    %69 = arith.truncf %68 : vector<16x128xf32> to vector<16x128xbf16>
    %cst_42 = arith.constant dense<0.000000e+00> : vector<16x128xf32>
    %70 = tpu.matmul %69, %18, %cst_42 {dimension_numbers = #tpu.dot_dimension_numbers<[1], [0], [0], [1], [0, 0, 1, 1], [], []>} : vector<16x128xbf16>, vector<128x128xbf16>, vector<16x128xf32> -> vector<16x128xf32>
    %71 = vector.broadcast %27 : vector<1x128xf32> to vector<16x128xf32>
    %72 = arith.addf %70, %71 : vector<16x128xf32>
    %cst_43 = arith.constant 0.000000e+00 : f32
    %73 = vector.broadcast %cst_43 : f32 to vector<16x128xf32>
    %74 = arith.maximumf %72, %73 : vector<16x128xf32>
    %75 = vector.broadcast %cst_43 : f32 to vector<16x128xf32>
    %76 = arith.subf %72, %75 : vector<16x128xf32>
    %77 = arith.cmpf one, %76, %76 : vector<16x128xf32>
    %78 = vector.broadcast %cst_43 : f32 to vector<16x128xf32>
    %79 = arith.addf %72, %78 : vector<16x128xf32>
    %80 = math.absf %76 : vector<16x128xf32>
    %cst_44 = arith.constant 0.000000e+00 : f32
    %81 = vector.broadcast %cst_44 : f32 to vector<16x128xf32>
    %82 = arith.subf %81, %80 : vector<16x128xf32>
    %83 = math.exp %82 : vector<16x128xf32>
    %84 = math.log1p %83 : vector<16x128xf32>
    %85 = arith.addf %74, %84 : vector<16x128xf32>
    %86 = arith.select %77, %79, %85 : vector<16x128xi1>, vector<16x128xf32>
    %cst_45 = arith.constant 0.693147182 : f32
    %87 = vector.broadcast %cst_45 : f32 to vector<16x128xf32>
    %88 = arith.subf %86, %87 : vector<16x128xf32>
    %89 = arith.truncf %88 : vector<16x128xf32> to vector<16x128xbf16>
    %cst_46 = arith.constant dense<0.000000e+00> : vector<16x128xf32>
    %90 = tpu.matmul %89, %21, %cst_46 {dimension_numbers = #tpu.dot_dimension_numbers<[1], [0], [0], [1], [0, 0, 1, 1], [], []>} : vector<16x128xbf16>, vector<128x128xbf16>, vector<16x128xf32> -> vector<16x128xf32>
    %91 = vector.broadcast %29 : vector<1x128xf32> to vector<16x128xf32>
    %92 = arith.addf %90, %91 : vector<16x128xf32>
    %93 = arith.addf %3, %92 : vector<16x128xf32>
    %c0_47 = arith.constant 0 : index
    %c0_48 = arith.constant 0 : index
    %94 = vector.load %arg15[%c0_47, %c0_48] : memref<16x128xf32, #tpu.memory_space<vmem>>, vector<16x128xf32>
    tpu.vector_store %arg15[%c0_47, %c0_48], %93 {strides = array<i32>} : memref<16x128xf32, #tpu.memory_space<vmem>>, vector<16x128xf32>,
    return
  }
  func.func @transform_0(%arg0: i32, %arg1: i32) -> (i32, i32) {
    %c0_i32 = arith.constant 0 : i32
    %c0_i32_0 = arith.constant 0 : i32
    return %arg0, %c0_i32 : i32, i32
  }
  func.func @transform_1(%arg0: i32, %arg1: i32) -> (i32, i32) {
    %c0_i32 = arith.constant 0 : i32
    %c0_i32_0 = arith.constant 0 : i32
    return %arg0, %c0_i32 : i32, i32
  }
  func.func @transform_2(%arg0: i32, %arg1: i32) -> (i32, i32) {
    %c0_i32 = arith.constant 0 : i32
    %c0_i32_0 = arith.constant 0 : i32
    return %arg0, %c0_i32 : i32, i32
  }
  func.func @transform_3(%arg0: i32, %arg1: i32) -> (i32, i32) {
    %c0_i32 = arith.constant 0 : i32
    %c0_i32_0 = arith.constant 0 : i32
    return %arg0, %c0_i32 : i32, i32
  }
  func.func @transform_4(%arg0: i32, %arg1: i32) -> (i32, i32, i32) {
    %c0_i32 = arith.constant 0 : i32
    %c0_i32_0 = arith.constant 0 : i32
    %c0_i32_1 = arith.constant 0 : i32
    return %arg1, %c0_i32, %c0_i32_0 : i32, i32, i32
  }
  func.func @transform_5(%arg0: i32, %arg1: i32) -> (i32, i32, i32) {
    %c0_i32 = arith.constant 0 : i32
    %c0_i32_0 = arith.constant 0 : i32
    %c0_i32_1 = arith.constant 0 : i32
    return %arg1, %c0_i32, %c0_i32_0 : i32, i32, i32
  }
  func.func @transform_6(%arg0: i32, %arg1: i32) -> (i32, i32, i32) {
    %c0_i32 = arith.constant 0 : i32
    %c0_i32_0 = arith.constant 0 : i32
    %c0_i32_1 = arith.constant 0 : i32
    return %arg1, %c0_i32, %c0_i32_0 : i32, i32, i32
  }
  func.func @transform_7(%arg0: i32, %arg1: i32) -> (i32, i32, i32) {
    %c0_i32 = arith.constant 0 : i32
    %c0_i32_0 = arith.constant 0 : i32
    %c0_i32_1 = arith.constant 0 : i32
    return %arg1, %c0_i32, %c0_i32_0 : i32, i32, i32
  }
  func.func @transform_8(%arg0: i32, %arg1: i32) -> (i32, i32, i32) {
    %c0_i32 = arith.constant 0 : i32
    %c0_i32_0 = arith.constant 0 : i32
    %c0_i32_1 = arith.constant 0 : i32
    return %arg1, %c0_i32, %c0_i32_0 : i32, i32, i32
  }
  func.func @transform_9(%arg0: i32, %arg1: i32) -> (i32, i32, i32) {
    %c0_i32 = arith.constant 0 : i32
    %c0_i32_0 = arith.constant 0 : i32
    %c0_i32_1 = arith.constant 0 : i32
    return %arg1, %c0_i32, %c0_i32_0 : i32, i32, i32
  }
  func.func @transform_10(%arg0: i32, %arg1: i32) -> (i32, i32, i32) {
    %c0_i32 = arith.constant 0 : i32
    %c0_i32_0 = arith.constant 0 : i32
    %c0_i32_1 = arith.constant 0 : i32
    return %arg1, %c0_i32, %c0_i32_0 : i32, i32, i32
  }
  func.func @transform_11(%arg0: i32, %arg1: i32) -> (i32, i32, i32) {
    %c0_i32 = arith.constant 0 : i32
    %c0_i32_0 = arith.constant 0 : i32
    %c0_i32_1 = arith.constant 0 : i32
    return %arg1, %c0_i32, %c0_i32_0 : i32, i32, i32
  }
  func.func @transform_12(%arg0: i32, %arg1: i32) -> (i32, i32, i32) {
    %c0_i32 = arith.constant 0 : i32
    %c0_i32_0 = arith.constant 0 : i32
    %c0_i32_1 = arith.constant 0 : i32
    return %arg1, %c0_i32, %c0_i32_0 : i32, i32, i32
  }
  func.func @transform_13(%arg0: i32, %arg1: i32) -> (i32, i32) {
    %c0_i32 = arith.constant 0 : i32
    %c0_i32_0 = arith.constant 0 : i32
    return %arg0, %c0_i32 : i32, i32
  }
}

</mosaic_0001>

<llo_original>
// kernel: tpu_custom_call.1
$region0: #{tpu_custom_call.1}
  #allocation0 [shape = 'u32[]', space=smem, size = 0x4, offset = 0x4, fixed_abs, tag = 'smem constant byte address 0x4 - core index']
  #allocation1 [shape = 'u32[144,128]{1,0:T(1,128)}', space=vmem, size = 0x12000, scoped, tag = 'internal scratch']
  %s0 = inlined_call_operand.vmem [shape: f32[32,128], index: 0, kind: input, shape index: {}]
  %s1 = inlined_call_operand.vmem [shape: f32[256,25], index: 1, kind: input, shape index: {}]
  %s2 = inlined_call_operand.vmem [shape: f32[256,1], index: 2, kind: input, shape index: {}]
  %s3 = inlined_call_operand.vmem [shape: s32[256,1], index: 3, kind: input, shape index: {}]
  %s4 = inlined_call_operand.hbm [shape: f32[3,25,128], index: 4, kind: input, shape index: {}]
  %s5 = inlined_call_operand.vmem [shape: f32[3,1,128], index: 5, kind: input, shape index: {}]
  %s6 = inlined_call_operand.vmem [shape: f32[3,128,128], index: 6, kind: input, shape index: {}]
  %s7 = inlined_call_operand.vmem [shape: f32[3,1,128], index: 7, kind: input, shape index: {}]
  %s8 = inlined_call_operand.vmem [shape: f32[3,128,128], index: 8, kind: input, shape index: {}]
  %s9 = inlined_call_operand.hbm [shape: f32[3,128,128], index: 9, kind: input, shape index: {}]
  %s10 = inlined_call_operand.vmem [shape: f32[3,1,128], index: 10, kind: input, shape index: {}]
  %s11 = inlined_call_operand.hbm [shape: f32[3,128,128], index: 11, kind: input, shape index: {}]
  %s12 = inlined_call_operand.vmem [shape: f32[3,1,128], index: 12, kind: input, shape index: {}]
  %s13 = inlined_call_operand.hbm [shape: f32[32,128], index: 13, kind: output, shape index: {}]
  %s14 = sld [smem:[#allocation0]]
  $region101: #{tpu_custom_call.1} parent=0
    _
  %s16 = ssub.s32 1, %s14
  %s17 = scalar_select 0, %s16, %s14
  $region1: #{tpu_custom_call.1} parent=0
    #allocation2 [shape = 'u8[32768]{0}', space=vmem, size = 0x8000, scoped, tag = 'input window, operand 4']
    #allocation3 [shape = 's32[2]{0}', space=sflag, size = 0x8, scoped, tag = 'scoped memory for tpu_custom_call.1']
    #allocation4 [shape = 's32[2]{0}', space=sflag, size = 0x8, scoped, tag = 'scoped memory for tpu_custom_call.1']
    #allocation5 [shape = 'u8[131072]{0}', space=vmem, size = 0x20000, scoped, tag = 'input window, operand 9']
    #allocation6 [shape = 's32[2]{0}', space=sflag, size = 0x8, scoped, tag = 'scoped memory for tpu_custom_call.1']
    #allocation7 [shape = 'u8[131072]{0}', space=vmem, size = 0x20000, scoped, tag = 'input window, operand 11']
    #allocation8 [shape = 'u8[16384]{0}', space=vmem, size = 0x4000, scoped, tag = 'output window, operand 0']
    %18 = vsyncpa [#allocation3], 0
    %s19 = scalar_lea.sflag [#allocation3], 1
    %20 = vsyncpa %s19, 0
    %21 = vsyncpa [#allocation6], 0
    %s22 = scalar_lea.sflag [#allocation6], 1
    %23 = vsyncpa %s22, 0
    %24 = vsyncpa [#allocation4], 0
    %s25 = scalar_lea.sflag [#allocation4], 1
    %26 = vsyncpa %s25, 0
    loop: start=0, step=1, limit=8
    $region2: #{tpu_custom_call.1} parent=1 // loop_pre_header
      _
    $region3: #{tpu_custom_call.1} parent=1 // loop_header
      %s28 = sphi 0, %s32
      %p29 = scmp.ge.s32.totalorder %s28, 8
      %s35 = sphi 0, %s47
      %s36 = sphi 0, %s43
      %s37 = sphi 0, %s35
      %s38 = sphi 0, %s36
      %s39 = sphi 0, %s37
      %s40 = sphi 0, %s38
      %s50 = sphi 0, %s52
      %s53 = sphi 0, %s50
      %s54 = sphi 0, %s53
      %s70 = sphi 0, %s54
      %s76 = sphi 0, %s78
      %s79 = sphi 0, %s76
      %s80 = sphi 0, %s79
      %s96 = sphi 0, %s80
      %s102 = sphi 0, %s104
      %s105 = sphi 0, %s102
      %s106 = sphi 0, %s105
      %s122 = sphi 0, %s106
      %s128 = sphi 0, %s130
      %s131 = sphi 0, %s128
      %s132 = sphi 0, %s131
      %s148 = sphi 0, %s132
      %s154 = sphi 0, %s156
      %s157 = sphi 0, %s154
      %s158 = sphi 0, %s157
      %s174 = sphi 0, %s158
      %s180 = sphi 0, %s182
      %s183 = sphi 0, %s180
      %s184 = sphi 0, %s183
      %s200 = sphi 0, %s184
      %s206 = sphi 0, %s208
      %s209 = sphi 0, %s206
      %s210 = sphi 0, %s209
      %s226 = sphi 0, %s210
      %s232 = sphi 0, %s234
      %s235 = sphi 0, %s232
      %s236 = sphi 0, %s235
      %s252 = sphi 0, %s236
      %s258 = sphi 0, %s260
      %s261 = sphi 0, %s258
      %s262 = sphi 0, %s261
      %s278 = sphi 0, %s262
      %s284 = sphi 0, %s286
      %s287 = sphi 0, %s284
      %s288 = sphi 0, %s287
      %s304 = sphi 0, %s288
      %s310 = sphi 0, %s312
      %s313 = sphi 0, %s310
      %s314 = sphi 0, %s313
      %s330 = sphi 0, %s314
      %s336 = sphi 0, %s338
      %s339 = sphi 0, %s336
      %s340 = sphi 0, %s339
      %s356 = sphi 0, %s340
      %s362 = sphi 0, %s364
      %s365 = sphi 0, %s362
      %s366 = sphi 0, %s365
      %s382 = sphi 0, %s366
      %s388 = sphi 0, %s390
      %s391 = sphi 0, %s388
      %s392 = sphi 0, %s391
      %s408 = sphi 0, %s392
    $region4: #{tpu_custom_call.1} parent=1 // loop_header_branch
      %31 = sbr.rel (%p29) target = $region8
    $region5: #{tpu_custom_call.1} parent=1 // loop_body
      %s33 = ssub.s32 %s28, 1
      %s34 = ssub.s32 %s28, 2
      %s41 = sadd.s32 1, %s36
      %p42 = scmp.ge.s32.totalorder %s41, 3
      %s43 = scalar_select %p42, 0, %s41
      %s44 = sadd.s32 1, %s35
      %s45 = scalar_select %p42, %s44, %s35
      %p46 = scmp.ge.s32.totalorder %s45, 2
      %s47 = scalar_select %p46, 0, %s45
      %s48 = ssub.s32 %s35, %s47
      %p49 = scmp.eq.s32.totalorder %s48, 0
      %s51 = sadd.s32 %s50, 1
      %s52 = scalar_select %p49, %s50, %s51
      %p55 = pneg %p49
      %p56 = scmp.eq.s32.totalorder %s28, 5
      %p57 = por %p55, %p56
      %p58 = scmp.ne.s32.totalorder %s50, %s53
      %p59 = scmp.eq.s32.totalorder %s28, 0
      %p60 = por %p58, %p59
      %p61 = scmp.ne.s32.totalorder %s50, %s53
      %p62 = scmp.eq.s32.totalorder %s33, 5
      %p63 = por %p61, %p62
      %p64 = scmp.ne.s32.totalorder %s53, %s54
      %p65 = scmp.eq.s32.totalorder %s33, 0
      %p66 = por %p64, %p65
      %p67 = scmp.ne.s32.totalorder %s53, %s54
      %p68 = scmp.eq.s32.totalorder %s34, 5
      %p69 = por %p67, %p68
      %p71 = scmp.ne.s32.totalorder %s54, %s70
      %p72 = scmp.eq.s32.totalorder %s34, 0
      %p73 = por %p71, %p72
      %s74 = ssub.s32 %s35, %s47
      %p75 = scmp.eq.s32.totalorder %s74, 0
      %s77 = sadd.s32 %s76, 1
      %s78 = scalar_select %p75, %s76, %s77
      %p81 = pneg %p75
      %p82 = scmp.eq.s32.totalorder %s28, 5
      %p83 = por %p81, %p82
      %p84 = scmp.ne.s32.totalorder %s76, %s79
      %p85 = scmp.eq.s32.totalorder %s28, 0
      %p86 = por %p84, %p85
      %p87 = scmp.ne.s32.totalorder %s76, %s79
      %p88 = scmp.eq.s32.totalorder %s33, 5
      %p89 = por %p87, %p88
      %p90 = scmp.ne.s32.totalorder %s79, %s80
      %p91 = scmp.eq.s32.totalorder %s33, 0
      %p92 = por %p90, %p91
      %p93 = scmp.ne.s32.totalorder %s79, %s80
      %p94 = scmp.eq.s32.totalorder %s34, 5
      %p95 = por %p93, %p94
      %p97 = scmp.ne.s32.totalorder %s80, %s96
      %p98 = scmp.eq.s32.totalorder %s34, 0
      %p99 = por %p97, %p98
      %s100 = ssub.s32 %s35, %s47
      %p101 = scmp.eq.s32.totalorder %s100, 0
      %s103 = sadd.s32 %s102, 1
      %s104 = scalar_select %p101, %s102, %s103
      %p107 = pneg %p101
      %p108 = scmp.eq.s32.totalorder %s28, 5
      %p109 = por %p107, %p108
      %p110 = scmp.ne.s32.totalorder %s102, %s105
      %p111 = scmp.eq.s32.totalorder %s28, 0
      %p112 = por %p110, %p111
      %p113 = scmp.ne.s32.totalorder %s102, %s105
      %p114 = scmp.eq.s32.totalorder %s33, 5
      %p115 = por %p113, %p114
      %p116 = scmp.ne.s32.totalorder %s105, %s106
      %p117 = scmp.eq.s32.totalorder %s33, 0
      %p118 = por %p116, %p117
      %p119 = scmp.ne.s32.totalorder %s105, %s106
      %p120 = scmp.eq.s32.totalorder %s34, 5
      %p121 = por %p119, %p120
      %p123 = scmp.ne.s32.totalorder %s106, %s122
      %p124 = scmp.eq.s32.totalorder %s34, 0
      %p125 = por %p123, %p124
      %s126 = ssub.s32 %s35, %s47
      %p127 = scmp.eq.s32.totalorder %s126, 0
      %s129 = sadd.s32 %s128, 1
      %s130 = scalar_select %p127, %s128, %s129
      %p133 = pneg %p127
      %p134 = scmp.eq.s32.totalorder %s28, 5
      %p135 = por %p133, %p134
      %p136 = scmp.ne.s32.totalorder %s128, %s131
      %p137 = scmp.eq.s32.totalorder %s28, 0
      %p138 = por %p136, %p137
      %p139 = scmp.ne.s32.totalorder %s128, %s131
      %p140 = scmp.eq.s32.totalorder %s33, 5
      %p141 = por %p139, %p140
      %p142 = scmp.ne.s32.totalorder %s131, %s132
      %p143 = scmp.eq.s32.totalorder %s33, 0
      %p144 = por %p142, %p143
      %p145 = scmp.ne.s32.totalorder %s131, %s132
      %p146 = scmp.eq.s32.totalorder %s34, 5
      %p147 = por %p145, %p146
      %p149 = scmp.ne.s32.totalorder %s132, %s148
      %p150 = scmp.eq.s32.totalorder %s34, 0
      %p151 = por %p149, %p150
      %s152 = ssub.s32 %s36, %s43
      %p153 = scmp.eq.s32.totalorder %s152, 0
      %s155 = sadd.s32 %s154, 1
      %s156 = scalar_select %p153, %s154, %s155
      %p159 = pneg %p153
      %p160 = scmp.eq.s32.totalorder %s28, 5
      %p161 = por %p159, %p160
      %p162 = scmp.ne.s32.totalorder %s154, %s157
      %p163 = scmp.eq.s32.totalorder %s28, 0
      %p164 = por %p162, %p163
      %p165 = scmp.ne.s32.totalorder %s154, %s157
      %p166 = scmp.eq.s32.totalorder %s33, 5
      %p167 = por %p165, %p166
      %p168 = scmp.ne.s32.totalorder %s157, %s158
      %p169 = scmp.eq.s32.totalorder %s33, 0
      %p170 = por %p168, %p169
      %p171 = scmp.ne.s32.totalorder %s157, %s158
      %p172 = scmp.eq.s32.totalorder %s34, 5
      %p173 = por %p171, %p172
      %p175 = scmp.ne.s32.totalorder %s158, %s174
      %p176 = scmp.eq.s32.totalorder %s34, 0
      %p177 = por %p175, %p176
      %s178 = ssub.s32 %s36, %s43
      %p179 = scmp.eq.s32.totalorder %s178, 0
      %s181 = sadd.s32 %s180, 1
      %s182 = scalar_select %p179, %s180, %s181
      %p185 = pneg %p179
      %p186 = scmp.eq.s32.totalorder %s28, 5
      %p187 = por %p185, %p186
      %p188 = scmp.ne.s32.totalorder %s180, %s183
      %p189 = scmp.eq.s32.totalorder %s28, 0
      %p190 = por %p188, %p189
      %p191 = scmp.ne.s32.totalorder %s180, %s183
      %p192 = scmp.eq.s32.totalorder %s33, 5
      %p193 = por %p191, %p192
      %p194 = scmp.ne.s32.totalorder %s183, %s184
      %p195 = scmp.eq.s32.totalorder %s33, 0
      %p196 = por %p194, %p195
      %p197 = scmp.ne.s32.totalorder %s183, %s184
      %p198 = scmp.eq.s32.totalorder %s34, 5
      %p199 = por %p197, %p198
      %p201 = scmp.ne.s32.totalorder %s184, %s200
      %p202 = scmp.eq.s32.totalorder %s34, 0
      %p203 = por %p201, %p202
      %s204 = ssub.s32 %s36, %s43
      %p205 = scmp.eq.s32.totalorder %s204, 0
      %s207 = sadd.s32 %s206, 1
      %s208 = scalar_select %p205, %s206, %s207
      %p211 = pneg %p205
      %p212 = scmp.eq.s32.totalorder %s28, 5
      %p213 = por %p211, %p212
      %p214 = scmp.ne.s32.totalorder %s206, %s209
      %p215 = scmp.eq.s32.totalorder %s28, 0
      %p216 = por %p214, %p215
      %p217 = scmp.ne.s32.totalorder %s206, %s209
      %p218 = scmp.eq.s32.totalorder %s33, 5
      %p219 = por %p217, %p218
      %p220 = scmp.ne.s32.totalorder %s209, %s210
      %p221 = scmp.eq.s32.totalorder %s33, 0
      %p222 = por %p220, %p221
      %p223 = scmp.ne.s32.totalorder %s209, %s210
      %p224 = scmp.eq.s32.totalorder %s34, 5
      %p225 = por %p223, %p224
      %p227 = scmp.ne.s32.totalorder %s210, %s226
      %p228 = scmp.eq.s32.totalorder %s34, 0
      %p229 = por %p227, %p228
      %s230 = ssub.s32 %s36, %s43
      %p231 = scmp.eq.s32.totalorder %s230, 0
      %s233 = sadd.s32 %s232, 1
      %s234 = scalar_select %p231, %s232, %s233
      %p237 = pneg %p231
      %p238 = scmp.eq.s32.totalorder %s28, 5
      %p239 = por %p237, %p238
      %p240 = scmp.ne.s32.totalorder %s232, %s235
      %p241 = scmp.eq.s32.totalorder %s28, 0
      %p242 = por %p240, %p241
      %p243 = scmp.ne.s32.totalorder %s232, %s235
      %p244 = scmp.eq.s32.totalorder %s33, 5
      %p245 = por %p243, %p244
      %p246 = scmp.ne.s32.totalorder %s235, %s236
      %p247 = scmp.eq.s32.totalorder %s33, 0
      %p248 = por %p246, %p247
      %p249 = scmp.ne.s32.totalorder %s235, %s236
      %p250 = scmp.eq.s32.totalorder %s34, 5
      %p251 = por %p249, %p250
      %p253 = scmp.ne.s32.totalorder %s236, %s252
      %p254 = scmp.eq.s32.totalorder %s34, 0
      %p255 = por %p253, %p254
      %s256 = ssub.s32 %s36, %s43
      %p257 = scmp.eq.s32.totalorder %s256, 0
      %s259 = sadd.s32 %s258, 1
      %s260 = scalar_select %p257, %s258, %s259
      %p263 = pneg %p257
      %p264 = scmp.eq.s32.totalorder %s28, 5
      %p265 = por %p263, %p264
      %p266 = scmp.ne.s32.totalorder %s258, %s261
      %p267 = scmp.eq.s32.totalorder %s28, 0
      %p268 = por %p266, %p267
      %p269 = scmp.ne.s32.totalorder %s258, %s261
      %p270 = scmp.eq.s32.totalorder %s33, 5
      %p271 = por %p269, %p270
      %p272 = scmp.ne.s32.totalorder %s261, %s262
      %p273 = scmp.eq.s32.totalorder %s33, 0
      %p274 = por %p272, %p273
      %p275 = scmp.ne.s32.totalorder %s261, %s262
      %p276 = scmp.eq.s32.totalorder %s34, 5
      %p277 = por %p275, %p276
      %p279 = scmp.ne.s32.totalorder %s262, %s278
      %p280 = scmp.eq.s32.totalorder %s34, 0
      %p281 = por %p279, %p280
      %s282 = ssub.s32 %s36, %s43
      %p283 = scmp.eq.s32.totalorder %s282, 0
      %s285 = sadd.s32 %s284, 1
      %s286 = scalar_select %p283, %s284, %s285
      %p289 = pneg %p283
      %p290 = scmp.eq.s32.totalorder %s28, 5
      %p291 = por %p289, %p290
      %p292 = scmp.ne.s32.totalorder %s284, %s287
      %p293 = scmp.eq.s32.totalorder %s28, 0
      %p294 = por %p292, %p293
      %p295 = scmp.ne.s32.totalorder %s284, %s287
      %p296 = scmp.eq.s32.totalorder %s33, 5
      %p297 = por %p295, %p296
      %p298 = scmp.ne.s32.totalorder %s287, %s288
      %p299 = scmp.eq.s32.totalorder %s33, 0
      %p300 = por %p298, %p299
      %p301 = scmp.ne.s32.totalorder %s287, %s288
      %p302 = scmp.eq.s32.totalorder %s34, 5
      %p303 = por %p301, %p302
      %p305 = scmp.ne.s32.totalorder %s288, %s304
      %p306 = scmp.eq.s32.totalorder %s34, 0
      %p307 = por %p305, %p306
      %s308 = ssub.s32 %s36, %s43
      %p309 = scmp.eq.s32.totalorder %s308, 0
      %s311 = sadd.s32 %s310, 1
      %s312 = scalar_select %p309, %s310, %s311
      %p315 = pneg %p309
      %p316 = scmp.eq.s32.totalorder %s28, 5
      %p317 = por %p315, %p316
      %p318 = scmp.ne.s32.totalorder %s310, %s313
      %p319 = scmp.eq.s32.totalorder %s28, 0
      %p320 = por %p318, %p319
      %p321 = scmp.ne.s32.totalorder %s310, %s313
      %p322 = scmp.eq.s32.totalorder %s33, 5
      %p323 = por %p321, %p322
      %p324 = scmp.ne.s32.totalorder %s313, %s314
      %p325 = scmp.eq.s32.totalorder %s33, 0
      %p326 = por %p324, %p325
      %p327 = scmp.ne.s32.totalorder %s313, %s314
      %p328 = scmp.eq.s32.totalorder %s34, 5
      %p329 = por %p327, %p328
      %p331 = scmp.ne.s32.totalorder %s314, %s330
      %p332 = scmp.eq.s32.totalorder %s34, 0
      %p333 = por %p331, %p332
      %s334 = ssub.s32 %s36, %s43
      %p335 = scmp.eq.s32.totalorder %s334, 0
      %s337 = sadd.s32 %s336, 1
      %s338 = scalar_select %p335, %s336, %s337
      %p341 = pneg %p335
      %p342 = scmp.eq.s32.totalorder %s28, 5
      %p343 = por %p341, %p342
      %p344 = scmp.ne.s32.totalorder %s336, %s339
      %p345 = scmp.eq.s32.totalorder %s28, 0
      %p346 = por %p344, %p345
      %p347 = scmp.ne.s32.totalorder %s336, %s339
      %p348 = scmp.eq.s32.totalorder %s33, 5
      %p349 = por %p347, %p348
      %p350 = scmp.ne.s32.totalorder %s339, %s340
      %p351 = scmp.eq.s32.totalorder %s33, 0
      %p352 = por %p350, %p351
      %p353 = scmp.ne.s32.totalorder %s339, %s340
      %p354 = scmp.eq.s32.totalorder %s34, 5
      %p355 = por %p353, %p354
      %p357 = scmp.ne.s32.totalorder %s340, %s356
      %p358 = scmp.eq.s32.totalorder %s34, 0
      %p359 = por %p357, %p358
      %s360 = ssub.s32 %s36, %s43
      %p361 = scmp.eq.s32.totalorder %s360, 0
      %s363 = sadd.s32 %s362, 1
      %s364 = scalar_select %p361, %s362, %s363
      %p367 = pneg %p361
      %p368 = scmp.eq.s32.totalorder %s28, 5
      %p369 = por %p367, %p368
      %p370 = scmp.ne.s32.totalorder %s362, %s365
      %p371 = scmp.eq.s32.totalorder %s28, 0
      %p372 = por %p370, %p371
      %p373 = scmp.ne.s32.totalorder %s362, %s365
      %p374 = scmp.eq.s32.totalorder %s33, 5
      %p375 = por %p373, %p374
      %p376 = scmp.ne.s32.totalorder %s365, %s366
      %p377 = scmp.eq.s32.totalorder %s33, 0
      %p378 = por %p376, %p377
      %p379 = scmp.ne.s32.totalorder %s365, %s366
      %p380 = scmp.eq.s32.totalorder %s34, 5
      %p381 = por %p379, %p380
      %p383 = scmp.ne.s32.totalorder %s366, %s382
      %p384 = scmp.eq.s32.totalorder %s34, 0
      %p385 = por %p383, %p384
      %s386 = ssub.s32 %s35, %s47
      %p387 = scmp.eq.s32.totalorder %s386, 0
      %s389 = sadd.s32 %s388, 1
      %s390 = scalar_select %p387, %s388, %s389
      %p393 = pneg %p387
      %p394 = scmp.eq.s32.totalorder %s28, 5
      %p395 = por %p393, %p394
      %p396 = scmp.ne.s32.totalorder %s388, %s391
      %p397 = scmp.eq.s32.totalorder %s28, 0
      %p398 = por %p396, %p397
      %p399 = scmp.ne.s32.totalorder %s388, %s391
      %p400 = scmp.eq.s32.totalorder %s33, 5
      %p401 = por %p399, %p400
      %p402 = scmp.ne.s32.totalorder %s391, %s392
      %p403 = scmp.eq.s32.totalorder %s33, 0
      %p404 = por %p402, %p403
      %p405 = scmp.ne.s32.totalorder %s391, %s392
      %p406 = scmp.eq.s32.totalorder %s34, 5
      %p407 = por %p405, %p406
      %p409 = scmp.ne.s32.totalorder %s392, %s408
      %p410 = scmp.eq.s32.totalorder %s34, 0
      %p411 = por %p409, %p410
      %p412 = scmp.le.s32.totalorder 1, %s28
      %p413 = scmp.lt.s32.totalorder %s28, 7
      %p414 = pnand %p412, %p413
      %p415 = pneg %p414
      // Predicated region
      $region9: #{tpu_custom_call.1} parent=5 // pred_check
        _
      $region10: #{tpu_custom_call.1} parent=5 // pred_check_branch
        %417 = sbr.rel (%p414) target = $region12
      $region11: #{tpu_custom_call.1} parent=5 // pred_region
        %s418 = ssub.s32 %s28, 1
      $region12: #{tpu_custom_call.1} parent=5 // pred_fallthru
        _
      %p419 = scmp.lt.s32.totalorder %s28, 6
      // Predicated region
      $region13: #{tpu_custom_call.1} parent=5 // pred_check
        %p420 = pneg %p419
      $region14: #{tpu_custom_call.1} parent=5 // pred_check_branch
        %422 = sbr.rel (%p420) target = $region16
      $region15: #{tpu_custom_call.1} parent=5 // pred_region
        // Predicated region
        $region17: #{tpu_custom_call.1} parent=15 // pred_check
          %p423 = pneg %p60
        $region18: #{tpu_custom_call.1} parent=15 // pred_check_branch
          %425 = sbr.rel (%p423) target = $region20
        $region19: #{tpu_custom_call.1} parent=15 // pred_region
          %s426 = smul.u32 2, %s35
          %p427 = scmp.lt.s32.totalorder %s426, 3
          %s428 = scalar_select %p427, %s426, 3
          %s429 = smul.addr %s428, 8
          %s430 = scalar_lea.vmem %s0, %s429
          %s431 = smul.u32 2, %s35
        $region20: #{tpu_custom_call.1} parent=15 // pred_fallthru
          _
        // Predicated region
        $region21: #{tpu_custom_call.1} parent=15 // pred_check
          %p432 = pneg %p86
        $region22: #{tpu_custom_call.1} parent=15 // pred_check_branch
          %434 = sbr.rel (%p432) target = $region24
        $region23: #{tpu_custom_call.1} parent=15 // pred_region
          %s435 = smul.u32 16, %s35
          %p436 = scmp.lt.s32.totalorder %s435, 31
          %s437 = scalar_select %p436, %s435, 31
          %s438 = smul.addr %s437, 8
          %s439 = scalar_lea.vmem %s1, %s438
          %s440 = smul.u32 16, %s35
        $region24: #{tpu_custom_call.1} parent=15 // pred_fallthru
          _
        // Predicated region
        $region25: #{tpu_custom_call.1} parent=15 // pred_check
          %p441 = pneg %p112
        $region26: #{tpu_custom_call.1} parent=15 // pred_check_branch
          %443 = sbr.rel (%p441) target = $region28
        $region27: #{tpu_custom_call.1} parent=15 // pred_region
          %s444 = smul.u32 16, %s35
          %p445 = scmp.lt.s32.totalorder %s444, 31
          %s446 = scalar_select %p445, %s444, 31
          %s447 = smul.addr %s446, 8
          %s448 = scalar_lea.vmem %s2, %s447
          %s449 = smul.u32 16, %s35
        $region28: #{tpu_custom_call.1} parent=15 // pred_fallthru
          _
        // Predicated region
        $region29: #{tpu_custom_call.1} parent=15 // pred_check
          %p450 = pneg %p138
        $region30: #{tpu_custom_call.1} parent=15 // pred_check_branch
          %452 = sbr.rel (%p450) target = $region32
        $region31: #{tpu_custom_call.1} parent=15 // pred_region
          %s453 = smul.u32 16, %s35
          %p454 = scmp.lt.s32.totalorder %s453, 31
          %s455 = scalar_select %p454, %s453, 31
          %s456 = smul.addr %s455, 8
          %s457 = scalar_lea.vmem %s3, %s456
          %s458 = smul.u32 16, %s35
        $region32: #{tpu_custom_call.1} parent=15 // pred_fallthru
          _
        // Predicated region
        $region33: #{tpu_custom_call.1} parent=15 // pred_check
          %p459 = pneg %p164
        $region34: #{tpu_custom_call.1} parent=15 // pred_check_branch
          %461 = sbr.rel (%p459) target = $region36
        $region35: #{tpu_custom_call.1} parent=15 // pred_region
          %s462 = sand.u32 %s154, 1
          %s463 = scalar_lea.sflag [#allocation3], %s462
          %s464 = sand.u32 %s154, 1
          %s465 = smul.addr %s464, 32
          %s466 = scalar_lea.vmem [#allocation2], %s465
          %s468 = ssub.s32 512, 512
          %469 = vsyncadd %s463, %s468
          %s470 = smul.addr %s36, 4
          %s471 = smul.addr %s470, 128
          %s472 = scalar_lea.hbm %s4, %s471
          %s473 = sshll.u32 %s466, 4
          %s474 = int_to_ptr.vmem [resolvable:$true] %s473
          %479 = dma.hbm_to_vmem [thread:$0]  %s472, 512, %s474, %s463, 128, 128, 8
        $region36: #{tpu_custom_call.1} parent=15 // pred_fallthru
          _
        // Predicated region
        $region37: #{tpu_custom_call.1} parent=15 // pred_check
          %p480 = pneg %p190
        $region38: #{tpu_custom_call.1} parent=15 // pred_check_branch
          %482 = sbr.rel (%p480) target = $region40
        $region39: #{tpu_custom_call.1} parent=15 // pred_region
          %p483 = scmp.lt.s32.totalorder %s36, 2
          %s484 = scalar_select %p483, %s36, 2
          %s485 = scalar_lea.vmem %s5, %s484
        $region40: #{tpu_custom_call.1} parent=15 // pred_fallthru
          _
        // Predicated region
        $region41: #{tpu_custom_call.1} parent=15 // pred_check
          %p486 = pneg %p216
        $region42: #{tpu_custom_call.1} parent=15 // pred_check_branch
          %488 = sbr.rel (%p486) target = $region44
        $region43: #{tpu_custom_call.1} parent=15 // pred_region
          %p489 = scmp.lt.s32.totalorder %s36, 2
          %s490 = scalar_select %p489, %s36, 2
          %s491 = smul.addr %s490, 16
          %s492 = smul.addr %s491, 8
          %s493 = scalar_lea.vmem %s6, %s492
        $region44: #{tpu_custom_call.1} parent=15 // pred_fallthru
          _
        // Predicated region
        $region45: #{tpu_custom_call.1} parent=15 // pred_check
          %p494 = pneg %p242
        $region46: #{tpu_custom_call.1} parent=15 // pred_check_branch
          %496 = sbr.rel (%p494) target = $region48
        $region47: #{tpu_custom_call.1} parent=15 // pred_region
          %p497 = scmp.lt.s32.totalorder %s36, 2
          %s498 = scalar_select %p497, %s36, 2
          %s499 = scalar_lea.vmem %s7, %s498
        $region48: #{tpu_custom_call.1} parent=15 // pred_fallthru
          _
        // Predicated region
        $region49: #{tpu_custom_call.1} parent=15 // pred_check
          %p500 = pneg %p268
        $region50: #{tpu_custom_call.1} parent=15 // pred_check_branch
          %502 = sbr.rel (%p500) target = $region52
        $region51: #{tpu_custom_call.1} parent=15 // pred_region
          %p503 = scmp.lt.s32.totalorder %s36, 2
          %s504 = scalar_select %p503, %s36, 2
          %s505 = smul.addr %s504, 16
          %s506 = smul.addr %s505, 8
          %s507 = scalar_lea.vmem %s8, %s506
        $region52: #{tpu_custom_call.1} parent=15 // pred_fallthru
          _
        // Predicated region
        $region53: #{tpu_custom_call.1} parent=15 // pred_check
          %p508 = pneg %p294
        $region54: #{tpu_custom_call.1} parent=15 // pred_check_branch
          %510 = sbr.rel (%p508) target = $region56
        $region55: #{tpu_custom_call.1} parent=15 // pred_region
          %s511 = sand.u32 %s28, 1
          %s512 = scalar_lea.sflag [#allocation6], %s511
          %s513 = sand.u32 %s284, 1
          %s514 = smul.addr %s513, 128
          %s515 = scalar_lea.vmem [#allocation5], %s514
          %s517 = ssub.s32 2048, 2048
          %518 = vsyncadd %s512, %s517
          %s519 = smul.addr %s36, 16
          %s520 = smul.addr %s519, 128
          %s521 = scalar_lea.hbm %s9, %s520
          %s522 = sshll.u32 %s515, 4
          %s523 = int_to_ptr.vmem [resolvable:$true] %s522
          %528 = dma.hbm_to_vmem [thread:$0]  %s521, 2048, %s523, %s512, 128, 128, 8
        $region56: #{tpu_custom_call.1} parent=15 // pred_fallthru
          _
        // Predicated region
        $region57: #{tpu_custom_call.1} parent=15 // pred_check
          %p529 = pneg %p320
        $region58: #{tpu_custom_call.1} parent=15 // pred_check_branch
          %531 = sbr.rel (%p529) target = $region60
        $region59: #{tpu_custom_call.1} parent=15 // pred_region
          %p532 = scmp.lt.s32.totalorder %s36, 2
          %s533 = scalar_select %p532, %s36, 2
          %s534 = scalar_lea.vmem %s10, %s533
        $region60: #{tpu_custom_call.1} parent=15 // pred_fallthru
          _
        // Predicated region
        $region61: #{tpu_custom_call.1} parent=15 // pred_check
          %p535 = pneg %p346
        $region62: #{tpu_custom_call.1} parent=15 // pred_check_branch
          %537 = sbr.rel (%p535) target = $region64
        $region63: #{tpu_custom_call.1} parent=15 // pred_region
          %s538 = sand.u32 %s28, 1
          %s539 = scalar_lea.sflag [#allocation6], %s538
          %s540 = sand.u32 %s336, 1
          %s541 = smul.addr %s540, 128
          %s542 = scalar_lea.vmem [#allocation7], %s541
          %s544 = ssub.s32 2048, 2048
          %545 = vsyncadd %s539, %s544
          %s546 = smul.addr %s36, 16
          %s547 = smul.addr %s546, 128
          %s548 = scalar_lea.hbm %s11, %s547
          %s549 = sshll.u32 %s542, 4
          %s550 = int_to_ptr.vmem [resolvable:$true] %s549
          %555 = dma.hbm_to_vmem [thread:$0]  %s548, 2048, %s550, %s539, 128, 128, 8
        $region64: #{tpu_custom_call.1} parent=15 // pred_fallthru
          _
        // Predicated region
        $region65: #{tpu_custom_call.1} parent=15 // pred_check
          %p556 = pneg %p372
        $region66: #{tpu_custom_call.1} parent=15 // pred_check_branch
          %558 = sbr.rel (%p556) target = $region68
        $region67: #{tpu_custom_call.1} parent=15 // pred_region
          %p559 = scmp.lt.s32.totalorder %s36, 2
          %s560 = scalar_select %p559, %s36, 2
          %s561 = scalar_lea.vmem %s12, %s560
        $region68: #{tpu_custom_call.1} parent=15 // pred_fallthru
          _
      $region16: #{tpu_custom_call.1} parent=5 // pred_fallthru
        _
      %p562 = scmp.le.s32.totalorder 1, %s28
      %p563 = scmp.lt.s32.totalorder %s28, 7
      %p564 = pnand %p562, %p563
      %p565 = pneg %p564
      // Predicated region
      $region69: #{tpu_custom_call.1} parent=5 // pred_check
        _
      $region70: #{tpu_custom_call.1} parent=5 // pred_check_branch
        %567 = sbr.rel (%p564) target = $region72
      $region71: #{tpu_custom_call.1} parent=5 // pred_region
        %s568 = ssub.s32 %s28, 1
        %s569 = sand.u32 %s157, 1
        %s570 = scalar_lea.sflag [#allocation3], %s569
        %s571 = sand.u32 %s157, 1
        %s572 = smul.addr %s571, 32
        %s573 = scalar_lea.vmem [#allocation2], %s572
        // Predicated region
        $region73: #{tpu_custom_call.1} parent=71 // pred_check
          %p574 = pneg %p170
        $region74: #{tpu_custom_call.1} parent=71 // pred_check_branch
          %576 = sbr.rel (%p574) target = $region76
        $region75: #{tpu_custom_call.1} parent=71 // pred_region
          %577 = dma.done %s570, 512
        $region76: #{tpu_custom_call.1} parent=71 // pred_fallthru
          _
        %s578 = sand.u32 %s33, 1
        %s579 = scalar_lea.sflag [#allocation6], %s578
        %s580 = sand.u32 %s287, 1
        %s581 = smul.addr %s580, 128
        %s582 = scalar_lea.vmem [#allocation5], %s581
        // Predicated region
        $region77: #{tpu_custom_call.1} parent=71 // pred_check
          %p583 = pneg %p300
        $region78: #{tpu_custom_call.1} parent=71 // pred_check_branch
          %585 = sbr.rel (%p583) target = $region80
        $region79: #{tpu_custom_call.1} parent=71 // pred_region
          %586 = dma.done %s579, 2048
        $region80: #{tpu_custom_call.1} parent=71 // pred_fallthru
          _
        %s587 = sand.u32 %s33, 1
        %s588 = scalar_lea.sflag [#allocation6], %s587
        %s589 = sand.u32 %s339, 1
        %s590 = smul.addr %s589, 128
        %s591 = scalar_lea.vmem [#allocation7], %s590
        // Predicated region
        $region81: #{tpu_custom_call.1} parent=71 // pred_check
          %p592 = pneg %p352
        $region82: #{tpu_custom_call.1} parent=71 // pred_check_branch
          %594 = sbr.rel (%p592) target = $region84
        $region83: #{tpu_custom_call.1} parent=71 // pred_region
          %595 = dma.done %s588, 2048
        $region84: #{tpu_custom_call.1} parent=71 // pred_fallthru
          _
        %s596 = smul.u32 2, %s37
        %p597 = scmp.lt.s32.totalorder %s596, 3
        %s598 = scalar_select %p597, %s596, 3
        %s599 = smul.addr %s598, 8
        %s600 = scalar_lea.vmem %s0, %s599
        %p601 = pneg %p66
        %p602 = pneg %p63
        %s603 = smul.u32 16, %s37
        %p604 = scmp.lt.s32.totalorder %s603, 31
        %s605 = scalar_select %p604, %s603, 31
        %s606 = smul.addr %s605, 8
        %s607 = scalar_lea.vmem %s1, %s606
        %p608 = pneg %p92
        %p609 = pneg %p89
        %s610 = smul.u32 16, %s37
        %p611 = scmp.lt.s32.totalorder %s610, 31
        %s612 = scalar_select %p611, %s610, 31
        %s613 = smul.addr %s612, 8
        %s614 = scalar_lea.vmem %s2, %s613
        %p615 = pneg %p118
        %p616 = pneg %p115
        %s617 = smul.u32 16, %s37
        %p618 = scmp.lt.s32.totalorder %s617, 31
        %s619 = scalar_select %p618, %s617, 31
        %s620 = smul.addr %s619, 8
        %s621 = scalar_lea.vmem %s3, %s620
        %p622 = pneg %p144
        %p623 = pneg %p141
        %s624 = sand.u32 %s157, 1
        %s625 = scalar_lea.sflag [#allocation3], %s624
        %s626 = sand.u32 %s157, 1
        %s627 = smul.addr %s626, 32
        %s628 = scalar_lea.vmem [#allocation2], %s627
        %p629 = pneg %p170
        %p630 = pneg %p167
        %p631 = scmp.lt.s32.totalorder %s38, 2
        %s632 = scalar_select %p631, %s38, 2
        %s633 = scalar_lea.vmem %s5, %s632
        %p634 = pneg %p196
        %p635 = pneg %p193
        %p636 = scmp.lt.s32.totalorder %s38, 2
        %s637 = scalar_select %p636, %s38, 2
        %s638 = smul.addr %s637, 16
        %s639 = smul.addr %s638, 8
        %s640 = scalar_lea.vmem %s6, %s639
        %p641 = pneg %p222
        %p642 = pneg %p219
        %p643 = scmp.lt.s32.totalorder %s38, 2
        %s644 = scalar_select %p643, %s38, 2
        %s645 = scalar_lea.vmem %s7, %s644
        %p646 = pneg %p248
        %p647 = pneg %p245
        %p648 = scmp.lt.s32.totalorder %s38, 2
        %s649 = scalar_select %p648, %s38, 2
        %s650 = smul.addr %s649, 16
        %s651 = smul.addr %s650, 8
        %s652 = scalar_lea.vmem %s8, %s651
        %p653 = pneg %p274
        %p654 = pneg %p271
        %s655 = sand.u32 %s33, 1
        %s656 = scalar_lea.sflag [#allocation6], %s655
        %s657 = sand.u32 %s287, 1
        %s658 = smul.addr %s657, 128
        %s659 = scalar_lea.vmem [#allocation5], %s658
        %p660 = pneg %p300
        %p661 = pneg %p297
        %p662 = scmp.lt.s32.totalorder %s38, 2
        %s663 = scalar_select %p662, %s38, 2
        %s664 = scalar_lea.vmem %s10, %s663
        %p665 = pneg %p326
        %p666 = pneg %p323
        %s667 = sand.u32 %s33, 1
        %s668 = scalar_lea.sflag [#allocation6], %s667
        %s669 = sand.u32 %s339, 1
        %s670 = smul.addr %s669, 128
        %s671 = scalar_lea.vmem [#allocation7], %s670
        %p672 = pneg %p352
        %p673 = pneg %p349
        %p674 = scmp.lt.s32.totalorder %s38, 2
        %s675 = scalar_select %p674, %s38, 2
        %s676 = scalar_lea.vmem %s12, %s675
        %p677 = pneg %p378
        %p678 = pneg %p375
        %p679 = pneg %p404
        %p680 = pneg %p401
        %s681 = sand.u32 %s391, 1
        %s682 = scalar_lea.sflag [#allocation4], %s681
        %s683 = sand.u32 %s391, 1
        %s684 = smul.addr %s683, 16
        %s685 = scalar_lea.vmem [#allocation8], %s684
        %s686 = smul.u32 2, %s37
        %p687 = scmp.lt.s32.totalorder %s686, 3
        %s688 = scalar_select %p687, %s686, 3
        %s689 = smul.addr %s688, 8
        %s690 = scalar_lea.vmem %s0, %s689
        %s691 = smul.u32 2, %s37
        %s692 = smul.u32 16, %s37
        %p693 = scmp.lt.s32.totalorder %s692, 31
        %s694 = scalar_select %p693, %s692, 31
        %s695 = smul.addr %s694, 8
        %s696 = scalar_lea.vmem %s1, %s695
        %s697 = smul.u32 16, %s37
        %s698 = smul.u32 16, %s37
        %p699 = scmp.lt.s32.totalorder %s698, 31
        %s700 = scalar_select %p699, %s698, 31
        %s701 = smul.addr %s700, 8
        %s702 = scalar_lea.vmem %s2, %s701
        %s703 = smul.u32 16, %s37
        %s704 = smul.u32 16, %s37
        %p705 = scmp.lt.s32.totalorder %s704, 31
        %s706 = scalar_select %p705, %s704, 31
        %s707 = smul.addr %s706, 8
        %s708 = scalar_lea.vmem %s3, %s707
        %s709 = smul.u32 16, %s37
        %p710 = scmp.lt.s32.totalorder %s38, 2
        %s711 = scalar_select %p710, %s38, 2
        %s712 = scalar_lea.vmem %s5, %s711
        %p713 = scmp.lt.s32.totalorder %s38, 2
        %s714 = scalar_select %p713, %s38, 2
        %s715 = smul.addr %s714, 16
        %s716 = smul.addr %s715, 8
        %s717 = scalar_lea.vmem %s6, %s716
        %p718 = scmp.lt.s32.totalorder %s38, 2
        %s719 = scalar_select %p718, %s38, 2
        %s720 = scalar_lea.vmem %s7, %s719
        %p721 = scmp.lt.s32.totalorder %s38, 2
        %s722 = scalar_select %p721, %s38, 2
        %s723 = smul.addr %s722, 16
        %s724 = smul.addr %s723, 8
        %s725 = scalar_lea.vmem %s8, %s724
        %p726 = scmp.lt.s32.totalorder %s38, 2
        %s727 = scalar_select %p726, %s38, 2
        %s728 = scalar_lea.vmem %s10, %s727
        %p729 = scmp.lt.s32.totalorder %s38, 2
        %s730 = scalar_select %p729, %s38, 2
        %s731 = scalar_lea.vmem %s12, %s730
        %s732 = smul.u32 2, %s37
        %p734 = scmp.eq.s32.totalorder %s38, 0
        // Predicated region
        $region85: #{tpu_custom_call.1} parent=71 // pred_check
          %p735 = pneg %p734
        $region86: #{tpu_custom_call.1} parent=71 // pred_check_branch
          %737 = sbr.rel (%p735) target = $region88
        $region87: #{tpu_custom_call.1} parent=71 // pred_region
          %v738 = vld [vmem:[%s690] sm:$0xff]
          %v739 = vld [vmem:[%s690 + $0x8] sm:$0xff]
          %740 = vst [vmem:[%s685] sm:$0xff] %v738
          %741 = vst [vmem:[%s685 + $0x8] sm:$0xff] %v739
        $region88: #{tpu_custom_call.1} parent=71 // pred_fallthru
          _
        %v742 = vld [vmem:[%s685] sm:$0xff]
        %v743 = vld [vmem:[%s685 + $0x8] sm:$0xff]
        %v744 = vld [vmem:[%s696] sm:$0xff]
        %v745 = vld [vmem:[%s696 + $0x8] sm:$0xff]
        %v746 = vld [vmem:[%s696 + $0x10] sm:$0xff]
        %v747 = vld [vmem:[%s696 + $0x18] sm:$0xff]
        %v748 = vld [vmem:[%s696 + $0x20] sm:$0xff]
        %v749 = vld [vmem:[%s696 + $0x28] sm:$0xff]
        %v750 = vld [vmem:[%s696 + $0x30] sm:$0xff]
        %v751 = vld [vmem:[%s696 + $0x38] sm:$0xff]
        %v752 = vld [vmem:[%s696 + $0x40] sm:$0xff]
        %v753 = vld [vmem:[%s696 + $0x48] sm:$0xff]
        %v754 = vld [vmem:[%s696 + $0x50] sm:$0xff]
        %v755 = vld [vmem:[%s696 + $0x58] sm:$0xff]
        %v756 = vld [vmem:[%s696 + $0x60] sm:$0xff]
        %v757 = vld [vmem:[%s696 + $0x68] sm:$0xff]
        %v758 = vld [vmem:[%s696 + $0x70] sm:$0xff]
        %v759 = vld [vmem:[%s696 + $0x78] sm:$0xff]
        %v760 = vld [vmem:[%s702] sm:$0xff]
        %v761 = vld [vmem:[%s702 + $0x8] sm:$0xff]
        %v762 = vld [vmem:[%s702 + $0x10] sm:$0xff]
        %v763 = vld [vmem:[%s702 + $0x18] sm:$0xff]
        %v764 = vld [vmem:[%s702 + $0x20] sm:$0xff]
        %v765 = vld [vmem:[%s702 + $0x28] sm:$0xff]
        %v766 = vld [vmem:[%s702 + $0x30] sm:$0xff]
        %v767 = vld [vmem:[%s702 + $0x38] sm:$0xff]
        %v768 = vld [vmem:[%s702 + $0x40] sm:$0xff]
        %v769 = vld [vmem:[%s702 + $0x48] sm:$0xff]
        %v770 = vld [vmem:[%s702 + $0x50] sm:$0xff]
        %v771 = vld [vmem:[%s702 + $0x58] sm:$0xff]
        %v772 = vld [vmem:[%s702 + $0x60] sm:$0xff]
        %v773 = vld [vmem:[%s702 + $0x68] sm:$0xff]
        %v774 = vld [vmem:[%s702 + $0x70] sm:$0xff]
        %v775 = vld [vmem:[%s702 + $0x78] sm:$0xff]
        %v776 = vld [vmem:[%s708] sm:$0xff]
        %v777 = vld [vmem:[%s708 + $0x8] sm:$0xff]
        %v778 = vld [vmem:[%s708 + $0x10] sm:$0xff]
        %v779 = vld [vmem:[%s708 + $0x18] sm:$0xff]
        %v780 = vld [vmem:[%s708 + $0x20] sm:$0xff]
        %v781 = vld [vmem:[%s708 + $0x28] sm:$0xff]
        %v782 = vld [vmem:[%s708 + $0x30] sm:$0xff]
        %v783 = vld [vmem:[%s708 + $0x38] sm:$0xff]
        %v784 = vld [vmem:[%s708 + $0x40] sm:$0xff]
        %v785 = vld [vmem:[%s708 + $0x48] sm:$0xff]
        %v786 = vld [vmem:[%s708 + $0x50] sm:$0xff]
        %v787 = vld [vmem:[%s708 + $0x58] sm:$0xff]
        %v788 = vld [vmem:[%s708 + $0x60] sm:$0xff]
        %v789 = vld [vmem:[%s708 + $0x68] sm:$0xff]
        %v790 = vld [vmem:[%s708 + $0x70] sm:$0xff]
        %v791 = vld [vmem:[%s708 + $0x78] sm:$0xff]
        %v792 = vld [vmem:[%s573] sm:$0xff]
        %v793 = vld [vmem:[%s573 + $0x8] sm:$0xff]
        %v794 = vld [vmem:[%s573 + $0x10] sm:$0xff]
        %v795 = vld [vmem:[%s573 + $0x18] sm:$0x1]
        %v796 = vpack.c.bf16 %v793, %v792
        %v797 = vpack.c.bf16 %v795, %v794
        %v798 = vld [vmem:[%s717] sm:$0xff]
        %v799 = vld [vmem:[%s717 + $0x8] sm:$0xff]
        %v800 = vld [vmem:[%s717 + $0x10] sm:$0xff]
        %v801 = vld [vmem:[%s717 + $0x18] sm:$0xff]
        %v802 = vld [vmem:[%s717 + $0x20] sm:$0xff]
        %v803 = vld [vmem:[%s717 + $0x28] sm:$0xff]
        %v804 = vld [vmem:[%s717 + $0x30] sm:$0xff]
        %v805 = vld [vmem:[%s717 + $0x38] sm:$0xff]
        %v806 = vld [vmem:[%s717 + $0x40] sm:$0xff]
        %v807 = vld [vmem:[%s717 + $0x48] sm:$0xff]
        %v808 = vld [vmem:[%s717 + $0x50] sm:$0xff]
        %v809 = vld [vmem:[%s717 + $0x58] sm:$0xff]
        %v810 = vld [vmem:[%s717 + $0x60] sm:$0xff]
        %v811 = vld [vmem:[%s717 + $0x68] sm:$0xff]
        %v812 = vld [vmem:[%s717 + $0x70] sm:$0xff]
        %v813 = vld [vmem:[%s717 + $0x78] sm:$0xff]
        %v814 = vpack.c.bf16 %v799, %v798
        %v815 = vpack.c.bf16 %v801, %v800
        %v816 = vpack.c.bf16 %v803, %v802
        %v817 = vpack.c.bf16 %v805, %v804
        %v818 = vpack.c.bf16 %v807, %v806
        %v819 = vpack.c.bf16 %v809, %v808
        %v820 = vpack.c.bf16 %v811, %v810
        %v821 = vpack.c.bf16 %v813, %v812
        %v822 = vld [vmem:[%s725] sm:$0xff]
        %v823 = vld [vmem:[%s725 + $0x8] sm:$0xff]
        %v824 = vld [vmem:[%s725 + $0x10] sm:$0xff]
        %v825 = vld [vmem:[%s725 + $0x18] sm:$0xff]
        %v826 = vld [vmem:[%s725 + $0x20] sm:$0xff]
        %v827 = vld [vmem:[%s725 + $0x28] sm:$0xff]
        %v828 = vld [vmem:[%s725 + $0x30] sm:$0xff]
        %v829 = vld [vmem:[%s725 + $0x38] sm:$0xff]
        %v830 = vld [vmem:[%s725 + $0x40] sm:$0xff]
        %v831 = vld [vmem:[%s725 + $0x48] sm:$0xff]
        %v832 = vld [vmem:[%s725 + $0x50] sm:$0xff]
        %v833 = vld [vmem:[%s725 + $0x58] sm:$0xff]
        %v834 = vld [vmem:[%s725 + $0x60] sm:$0xff]
        %v835 = vld [vmem:[%s725 + $0x68] sm:$0xff]
        %v836 = vld [vmem:[%s725 + $0x70] sm:$0xff]
        %v837 = vld [vmem:[%s725 + $0x78] sm:$0xff]
        %v838 = vpack.c.bf16 %v823, %v822
        %v839 = vpack.c.bf16 %v825, %v824
        %v840 = vpack.c.bf16 %v827, %v826
        %v841 = vpack.c.bf16 %v829, %v828
        %v842 = vpack.c.bf16 %v831, %v830
        %v843 = vpack.c.bf16 %v833, %v832
        %v844 = vpack.c.bf16 %v835, %v834
        %v845 = vpack.c.bf16 %v837, %v836
        %v846 = vld [vmem:[%s582] sm:$0xff]
        %v847 = vld [vmem:[%s582 + $0x8] sm:$0xff]
        %v848 = vld [vmem:[%s582 + $0x10] sm:$0xff]
        %v849 = vld [vmem:[%s582 + $0x18] sm:$0xff]
        %v850 = vld [vmem:[%s582 + $0x20] sm:$0xff]
        %v851 = vld [vmem:[%s582 + $0x28] sm:$0xff]
        %v852 = vld [vmem:[%s582 + $0x30] sm:$0xff]
        %v853 = vld [vmem:[%s582 + $0x38] sm:$0xff]
        %v854 = vld [vmem:[%s582 + $0x40] sm:$0xff]
        %v855 = vld [vmem:[%s582 + $0x48] sm:$0xff]
        %v856 = vld [vmem:[%s582 + $0x50] sm:$0xff]
        %v857 = vld [vmem:[%s582 + $0x58] sm:$0xff]
        %v858 = vld [vmem:[%s582 + $0x60] sm:$0xff]
        %v859 = vld [vmem:[%s582 + $0x68] sm:$0xff]
        %v860 = vld [vmem:[%s582 + $0x70] sm:$0xff]
        %v861 = vld [vmem:[%s582 + $0x78] sm:$0xff]
        %v862 = vpack.c.bf16 %v847, %v846
        %v863 = vpack.c.bf16 %v849, %v848
        %v864 = vpack.c.bf16 %v851, %v850
        %v865 = vpack.c.bf16 %v853, %v852
        %v866 = vpack.c.bf16 %v855, %v854
        %v867 = vpack.c.bf16 %v857, %v856
        %v868 = vpack.c.bf16 %v859, %v858
        %v869 = vpack.c.bf16 %v861, %v860
        %v870 = vld [vmem:[%s591] sm:$0xff]
        %v871 = vld [vmem:[%s591 + $0x8] sm:$0xff]
        %v872 = vld [vmem:[%s591 + $0x10] sm:$0xff]
        %v873 = vld [vmem:[%s591 + $0x18] sm:$0xff]
        %v874 = vld [vmem:[%s591 + $0x20] sm:$0xff]
        %v875 = vld [vmem:[%s591 + $0x28] sm:$0xff]
        %v876 = vld [vmem:[%s591 + $0x30] sm:$0xff]
        %v877 = vld [vmem:[%s591 + $0x38] sm:$0xff]
        %v878 = vld [vmem:[%s591 + $0x40] sm:$0xff]
        %v879 = vld [vmem:[%s591 + $0x48] sm:$0xff]
        %v880 = vld [vmem:[%s591 + $0x50] sm:$0xff]
        %v881 = vld [vmem:[%s591 + $0x58] sm:$0xff]
        %v882 = vld [vmem:[%s591 + $0x60] sm:$0xff]
        %v883 = vld [vmem:[%s591 + $0x68] sm:$0xff]
        %v884 = vld [vmem:[%s591 + $0x70] sm:$0xff]
        %v885 = vld [vmem:[%s591 + $0x78] sm:$0xff]
        %v886 = vpack.c.bf16 %v871, %v870
        %v887 = vpack.c.bf16 %v873, %v872
        %v888 = vpack.c.bf16 %v875, %v874
        %v889 = vpack.c.bf16 %v877, %v876
        %v890 = vpack.c.bf16 %v879, %v878
        %v891 = vpack.c.bf16 %v881, %v880
        %v892 = vpack.c.bf16 %v883, %v882
        %v893 = vpack.c.bf16 %v885, %v884
        %v894 = vld [vmem:[%s712] sm:$0x1]
        %v895 = vld [vmem:[%s720] sm:$0x1]
        %v896 = vld [vmem:[%s728] sm:$0x1]
        %v897 = vld [vmem:[%s731] sm:$0x1]
        %v898 = vpack.c.bf16 %v745, %v744
        %v899 = vpack.c.bf16 %v747, %v746
        %v900 = vpack.c.bf16 %v749, %v748
        %v901 = vpack.c.bf16 %v751, %v750
        %v902 = vpack.c.bf16 %v753, %v752
        %v903 = vpack.c.bf16 %v755, %v754
        %v904 = vpack.c.bf16 %v757, %v756
        %v905 = vpack.c.bf16 %v759, %v758
        %v907 = vlaneseq
        %v908 = vshrl.u32 %v907, 7
        %v909 = vsub.s32 0, %v908
        %v910 = vrot.slane %v894, %v909
        %vm912 = vcmask 203776
        %v914 = vsel %vm912, %v898, 0
        %v917 = vsel %vm912, %v899, 0
        %v920 = vsel %vm912, %v900, 0
        %v923 = vsel %vm912, %v901, 0
        %v926 = vsel %vm912, %v902, 0
        %v929 = vsel %vm912, %v903, 0
        %v932 = vsel %vm912, %v904, 0
        %v935 = vsel %vm912, %v905, 0
        %vm937 = vcmask 1043456
        %vm938 = vcmask 1044480
        %v939 = vsel %vm937, 4294967295, 65535
        %v940 = vsel %vm938, %v939, 0
        %v942 = vand.u32 %v797, %v940
        %944 = vmatprep.subr.bf16.mxu0 0
        %945 = vmatpush1.bf16.msra.mxu0 %v796
        %946 = vmatprep.subr.bf16.mxu0 0
        %947 = vmatpush1.bf16.msra.mxu0 %v942
        %948 = vmatprep.subr.bf16.mxu0 0
        %949 = vmatpush1.bf16.msra.mxu0 0
        %950 = vmatprep.subr.bf16.mxu0 0
        %951 = vmatpush1.bf16.msra.mxu0 0
        %952 = vmatprep.subr.bf16.mxu0 0
        %953 = vmatpush1.bf16.msra.mxu0 0
        %954 = vmatprep.subr.bf16.mxu0 0
        %955 = vmatpush1.bf16.msra.mxu0 0
        %956 = vmatprep.subr.bf16.mxu0 0
        %957 = vmatpush1.bf16.msra.mxu0 0
        %958 = vmatprep.subr.bf16.mxu0 0
        %959 = vmatpush1.bf16.msra.mxu0 0
        %960 = vmatprep.subr.bf16.mxu0 0
        %961 = vmatpush1.bf16.msra.mxu0 0
        %962 = vmatprep.subr.bf16.mxu0 0
        %963 = vmatpush1.bf16.msra.mxu0 0
        %964 = vmatprep.subr.bf16.mxu0 0
        %965 = vmatpush1.bf16.msra.mxu0 0
        %966 = vmatprep.subr.bf16.mxu0 0
        %967 = vmatpush1.bf16.msra.mxu0 0
        %968 = vmatprep.subr.bf16.mxu0 0
        %969 = vmatpush1.bf16.msra.mxu0 0
        %970 = vmatprep.subr.bf16.mxu0 0
        %971 = vmatpush1.bf16.msra.mxu0 0
        %972 = vmatprep.subr.bf16.mxu0 0
        %973 = vmatpush1.bf16.msra.mxu0 0
        %974 = vmatprep.subr.bf16.mxu0 0
        %975 = vmatpush1.bf16.msra.mxu0 0
        %976 = vmatprep.mubr.bf16.mxu0 0
        %977 = vmatmul.mubr.bf16.gmra.mrb[0].mxu0 %v914
        %v978 = vpop.f32.mrb[0].mxu0
        %v979 = vadd.f32 %v910, %v978
        %v980 = vpop.f32.mrb[0].mxu0
        %v981 = vpop.f32.mrb[0].mxu0
        %v982 = vadd.f32 %v910, %v981
        %v983 = vpop.f32.mrb[0].mxu0
        %984 = vmatprep.mubr.bf16.mxu0 0
        %985 = vmatmul.mubr.bf16.gmra.mrb[0].mxu0 %v917
        %v986 = vpop.f32.mrb[0].mxu0
        %v987 = vadd.f32 %v910, %v986
        %v988 = vpop.f32.mrb[0].mxu0
        %v989 = vpop.f32.mrb[0].mxu0
        %v990 = vadd.f32 %v910, %v989
        %v991 = vpop.f32.mrb[0].mxu0
        %992 = vmatprep.mubr.bf16.mxu0 0
        %993 = vmatmul.mubr.bf16.gmra.mrb[0].mxu0 %v920
        %v994 = vpop.f32.mrb[0].mxu0
        %v995 = vadd.f32 %v910, %v994
        %v996 = vpop.f32.mrb[0].mxu0
        %v997 = vpop.f32.mrb[0].mxu0
        %v998 = vadd.f32 %v910, %v997
        %v999 = vpop.f32.mrb[0].mxu0
        %1000 = vmatprep.mubr.bf16.mxu0 0
        %1001 = vmatmul.mubr.bf16.gmra.mrb[0].mxu0 %v923
        %v1002 = vpop.f32.mrb[0].mxu0
        %v1003 = vadd.f32 %v910, %v1002
        %v1004 = vpop.f32.mrb[0].mxu0
        %v1005 = vpop.f32.mrb[0].mxu0
        %v1006 = vadd.f32 %v910, %v1005
        %v1007 = vpop.f32.mrb[0].mxu0
        %1008 = vmatprep.mubr.bf16.mxu0 0
        %1009 = vmatmul.mubr.bf16.gmra.mrb[0].mxu0 %v926
        %v1010 = vpop.f32.mrb[0].mxu0
        %v1011 = vadd.f32 %v910, %v1010
        %v1012 = vpop.f32.mrb[0].mxu0
        %v1013 = vpop.f32.mrb[0].mxu0
        %v1014 = vadd.f32 %v910, %v1013
        %v1015 = vpop.f32.mrb[0].mxu0
        %1016 = vmatprep.mubr.bf16.mxu0 0
        %1017 = vmatmul.mubr.bf16.gmra.mrb[0].mxu0 %v929
        %v1018 = vpop.f32.mrb[0].mxu0
        %v1019 = vadd.f32 %v910, %v1018
        %v1020 = vpop.f32.mrb[0].mxu0
        %v1021 = vpop.f32.mrb[0].mxu0
        %v1022 = vadd.f32 %v910, %v1021
        %v1023 = vpop.f32.mrb[0].mxu0
        %1024 = vmatprep.mubr.bf16.mxu0 0
        %1025 = vmatmul.mubr.bf16.gmra.mrb[0].mxu0 %v932
        %v1026 = vpop.f32.mrb[0].mxu0
        %v1027 = vadd.f32 %v910, %v1026
        %v1028 = vpop.f32.mrb[0].mxu0
        %v1029 = vpop.f32.mrb[0].mxu0
        %v1030 = vadd.f32 %v910, %v1029
        %v1031 = vpop.f32.mrb[0].mxu0
        %1032 = vmatprep.mubr.bf16.mxu0 0
        %1033 = vmatmul.mubr.bf16.gmra.mrb[0].mxu0 %v935
        %v1034 = vpop.f32.mrb[0].mxu0
        %v1035 = vadd.f32 %v910, %v1034
        %v1036 = vpop.f32.mrb[0].mxu0
        %v1037 = vpop.f32.mrb[0].mxu0
        %v1038 = vadd.f32 %v910, %v1037
        %v1039 = vpop.f32.mrb[0].mxu0
        %1040 = vdwg.mxu0
        %v1041 = vmax.f32 %v979, 0.0
        %v1042 = vmax.f32 %v982, 0.0
        %v1043 = vmax.f32 %v987, 0.0
        %v1044 = vmax.f32 %v990, 0.0
        %v1045 = vmax.f32 %v995, 0.0
        %v1046 = vmax.f32 %v998, 0.0
        %v1047 = vmax.f32 %v1003, 0.0
        %v1048 = vmax.f32 %v1006, 0.0
        %v1049 = vmax.f32 %v1011, 0.0
        %v1050 = vmax.f32 %v1014, 0.0
        %v1051 = vmax.f32 %v1019, 0.0
        %v1052 = vmax.f32 %v1022, 0.0
        %v1053 = vmax.f32 %v1027, 0.0
        %v1054 = vmax.f32 %v1030, 0.0
        %v1055 = vmax.f32 %v1035, 0.0
        %v1056 = vmax.f32 %v1038, 0.0
        %vm1057 = vcmp.ne.f32.partialorder %v979, %v979
        %vm1058 = vcmp.ne.f32.partialorder %v982, %v982
        %vm1059 = vcmp.ne.f32.partialorder %v987, %v987
        %vm1060 = vcmp.ne.f32.partialorder %v990, %v990
        %vm1061 = vcmp.ne.f32.partialorder %v995, %v995
        %vm1062 = vcmp.ne.f32.partialorder %v998, %v998
        %vm1063 = vcmp.ne.f32.partialorder %v1003, %v1003
        %vm1064 = vcmp.ne.f32.partialorder %v1006, %v1006
        %vm1065 = vcmp.ne.f32.partialorder %v1011, %v1011
        %vm1066 = vcmp.ne.f32.partialorder %v1014, %v1014
        %vm1067 = vcmp.ne.f32.partialorder %v1019, %v1019
        %vm1068 = vcmp.ne.f32.partialorder %v1022, %v1022
        %vm1069 = vcmp.ne.f32.partialorder %v1027, %v1027
        %vm1070 = vcmp.ne.f32.partialorder %v1030, %v1030
        %vm1071 = vcmp.ne.f32.partialorder %v1035, %v1035
        %vm1072 = vcmp.ne.f32.partialorder %v1038, %v1038
        %v1073 = vadd.f32 %v979, 0.0
        %v1074 = vadd.f32 %v982, 0.0
        %v1075 = vadd.f32 %v987, 0.0
        %v1076 = vadd.f32 %v990, 0.0
        %v1077 = vadd.f32 %v995, 0.0
        %v1078 = vadd.f32 %v998, 0.0
        %v1079 = vadd.f32 %v1003, 0.0
        %v1080 = vadd.f32 %v1006, 0.0
        %v1081 = vadd.f32 %v1011, 0.0
        %v1082 = vadd.f32 %v1014, 0.0
        %v1083 = vadd.f32 %v1019, 0.0
        %v1084 = vadd.f32 %v1022, 0.0
        %v1085 = vadd.f32 %v1027, 0.0
        %v1086 = vadd.f32 %v1030, 0.0
        %v1087 = vadd.f32 %v1035, 0.0
        %v1088 = vadd.f32 %v1038, 0.0
        %v1089 = vand.u32 2147483647, %v979
        %v1090 = vand.u32 2147483647, %v982
        %v1091 = vand.u32 2147483647, %v987
        %v1092 = vand.u32 2147483647, %v990
        %v1093 = vand.u32 2147483647, %v995
        %v1094 = vand.u32 2147483647, %v998
        %v1095 = vand.u32 2147483647, %v1003
        %v1096 = vand.u32 2147483647, %v1006
        %v1097 = vand.u32 2147483647, %v1011
        %v1098 = vand.u32 2147483647, %v1014
        %v1099 = vand.u32 2147483647, %v1019
        %v1100 = vand.u32 2147483647, %v1022
        %v1101 = vand.u32 2147483647, %v1027
        %v1102 = vand.u32 2147483647, %v1030
        %v1103 = vand.u32 2147483647, %v1035
        %v1104 = vand.u32 2147483647, %v1038
        %v1105 = vsub.f32 0.0, %v1089
        %v1106 = vsub.f32 0.0, %v1090
        %v1107 = vsub.f32 0.0, %v1091
        %v1108 = vsub.f32 0.0, %v1092
        %v1109 = vsub.f32 0.0, %v1093
        %v1110 = vsub.f32 0.0, %v1094
        %v1111 = vsub.f32 0.0, %v1095
        %v1112 = vsub.f32 0.0, %v1096
        %v1113 = vsub.f32 0.0, %v1097
        %v1114 = vsub.f32 0.0, %v1098
        %v1115 = vsub.f32 0.0, %v1099
        %v1116 = vsub.f32 0.0, %v1100
        %v1117 = vsub.f32 0.0, %v1101
        %v1118 = vsub.f32 0.0, %v1102
        %v1119 = vsub.f32 0.0, %v1103
        %v1120 = vsub.f32 0.0, %v1104
        %v1121 = vmul.f32 %v1105, 1.442695
        %v1122 = vpow.pop %v1121
        %v1123 = vmul.f32 %v1106, 1.442695
        %v1124 = vpow.pop %v1123
        %v1125 = vmul.f32 %v1107, 1.442695
        %v1126 = vpow.pop %v1125
        %v1127 = vmul.f32 %v1108, 1.442695
        %v1128 = vpow.pop %v1127
        %v1129 = vmul.f32 %v1109, 1.442695
        %v1130 = vpow.pop %v1129
        %v1131 = vmul.f32 %v1110, 1.442695
        %v1132 = vpow.pop %v1131
        %v1133 = vmul.f32 %v1111, 1.442695
        %v1134 = vpow.pop %v1133
        %v1135 = vmul.f32 %v1112, 1.442695
        %v1136 = vpow.pop %v1135
        %v1137 = vmul.f32 %v1113, 1.442695
        %v1138 = vpow.pop %v1137
        %v1139 = vmul.f32 %v1114, 1.442695
        %v1140 = vpow.pop %v1139
        %v1141 = vmul.f32 %v1115, 1.442695
        %v1142 = vpow.pop %v1141
        %v1143 = vmul.f32 %v1116, 1.442695
        %v1144 = vpow.pop %v1143
        %v1145 = vmul.f32 %v1117, 1.442695
        %v1146 = vpow.pop %v1145
        %v1147 = vmul.f32 %v1118, 1.442695
        %v1148 = vpow.pop %v1147
        %v1149 = vmul.f32 %v1119, 1.442695
        %v1150 = vpow.pop %v1149
        %v1151 = vmul.f32 %v1120, 1.442695
        %v1152 = vpow.pop %v1151
        %v1153 = vadd.f32 %v1122, 1.0
        %v1154 = vlog2.pop %v1153
        %v1155 = vmul.f32 %v1154, 0.6931472
        %v1156 = vmul.f32 -0.5, %v1122
        %v1157 = vadd.f32 %v1156, 1.0
        %v1158 = vmul.f32 %v1157, %v1122
        %v1159 = vand.u32 2147483647, %v1122
        %vm1160 = vcmp.lt.f32.partialorder %v1159, 0.0004427343
        %v1161 = vsel %vm1160, %v1158, %v1155
        %v1162 = vadd.f32 %v1124, 1.0
        %v1163 = vlog2.pop %v1162
        %v1164 = vmul.f32 %v1163, 0.6931472
        %v1165 = vmul.f32 -0.5, %v1124
        %v1166 = vadd.f32 %v1165, 1.0
        %v1167 = vmul.f32 %v1166, %v1124
        %v1168 = vand.u32 2147483647, %v1124
        %vm1169 = vcmp.lt.f32.partialorder %v1168, 0.0004427343
        %v1170 = vsel %vm1169, %v1167, %v1164
        %v1171 = vadd.f32 %v1126, 1.0
        %v1172 = vlog2.pop %v1171
        %v1173 = vmul.f32 %v1172, 0.6931472
        %v1174 = vmul.f32 -0.5, %v1126
        %v1175 = vadd.f32 %v1174, 1.0
        %v1176 = vmul.f32 %v1175, %v1126
        %v1177 = vand.u32 2147483647, %v1126
        %vm1178 = vcmp.lt.f32.partialorder %v1177, 0.0004427343
        %v1179 = vsel %vm1178, %v1176, %v1173
        %v1180 = vadd.f32 %v1128, 1.0
        %v1181 = vlog2.pop %v1180
        %v1182 = vmul.f32 %v1181, 0.6931472
        %v1183 = vmul.f32 -0.5, %v1128
        %v1184 = vadd.f32 %v1183, 1.0
        %v1185 = vmul.f32 %v1184, %v1128
        %v1186 = vand.u32 2147483647, %v1128
        %vm1187 = vcmp.lt.f32.partialorder %v1186, 0.0004427343
        %v1188 = vsel %vm1187, %v1185, %v1182
        %v1189 = vadd.f32 %v1130, 1.0
        %v1190 = vlog2.pop %v1189
        %v1191 = vmul.f32 %v1190, 0.6931472
        %v1192 = vmul.f32 -0.5, %v1130
        %v1193 = vadd.f32 %v1192, 1.0
        %v1194 = vmul.f32 %v1193, %v1130
        %v1195 = vand.u32 2147483647, %v1130
        %vm1196 = vcmp.lt.f32.partialorder %v1195, 0.0004427343
        %v1197 = vsel %vm1196, %v1194, %v1191
        %v1198 = vadd.f32 %v1132, 1.0
        %v1199 = vlog2.pop %v1198
        %v1200 = vmul.f32 %v1199, 0.6931472
        %v1201 = vmul.f32 -0.5, %v1132
        %v1202 = vadd.f32 %v1201, 1.0
        %v1203 = vmul.f32 %v1202, %v1132
        %v1204 = vand.u32 2147483647, %v1132
        %vm1205 = vcmp.lt.f32.partialorder %v1204, 0.0004427343
        %v1206 = vsel %vm1205, %v1203, %v1200
        %v1207 = vadd.f32 %v1134, 1.0
        %v1208 = vlog2.pop %v1207
        %v1209 = vmul.f32 %v1208, 0.6931472
        %v1210 = vmul.f32 -0.5, %v1134
        %v1211 = vadd.f32 %v1210, 1.0
        %v1212 = vmul.f32 %v1211, %v1134
        %v1213 = vand.u32 2147483647, %v1134
        %vm1214 = vcmp.lt.f32.partialorder %v1213, 0.0004427343
        %v1215 = vsel %vm1214, %v1212, %v1209
        %v1216 = vadd.f32 %v1136, 1.0
        %v1217 = vlog2.pop %v1216
        %v1218 = vmul.f32 %v1217, 0.6931472
        %v1219 = vmul.f32 -0.5, %v1136
        %v1220 = vadd.f32 %v1219, 1.0
        %v1221 = vmul.f32 %v1220, %v1136
        %v1222 = vand.u32 2147483647, %v1136
        %vm1223 = vcmp.lt.f32.partialorder %v1222, 0.0004427343
        %v1224 = vsel %vm1223, %v1221, %v1218
        %v1225 = vadd.f32 %v1138, 1.0
        %v1226 = vlog2.pop %v1225
        %v1227 = vmul.f32 %v1226, 0.6931472
        %v1228 = vmul.f32 -0.5, %v1138
        %v1229 = vadd.f32 %v1228, 1.0
        %v1230 = vmul.f32 %v1229, %v1138
        %v1231 = vand.u32 2147483647, %v1138
        %vm1232 = vcmp.lt.f32.partialorder %v1231, 0.0004427343
        %v1233 = vsel %vm1232, %v1230, %v1227
        %v1234 = vadd.f32 %v1140, 1.0
        %v1235 = vlog2.pop %v1234
        %v1236 = vmul.f32 %v1235, 0.6931472
        %v1237 = vmul.f32 -0.5, %v1140
        %v1238 = vadd.f32 %v1237, 1.0
        %v1239 = vmul.f32 %v1238, %v1140
        %v1240 = vand.u32 2147483647, %v1140
        %vm1241 = vcmp.lt.f32.partialorder %v1240, 0.0004427343
        %v1242 = vsel %vm1241, %v1239, %v1236
        %v1243 = vadd.f32 %v1142, 1.0
        %v1244 = vlog2.pop %v1243
        %v1245 = vmul.f32 %v1244, 0.6931472
        %v1246 = vmul.f32 -0.5, %v1142
        %v1247 = vadd.f32 %v1246, 1.0
        %v1248 = vmul.f32 %v1247, %v1142
        %v1249 = vand.u32 2147483647, %v1142
        %vm1250 = vcmp.lt.f32.partialorder %v1249, 0.0004427343
        %v1251 = vsel %vm1250, %v1248, %v1245
        %v1252 = vadd.f32 %v1144, 1.0
        %v1253 = vlog2.pop %v1252
        %v1254 = vmul.f32 %v1253, 0.6931472
        %v1255 = vmul.f32 -0.5, %v1144
        %v1256 = vadd.f32 %v1255, 1.0
        %v1257 = vmul.f32 %v1256, %v1144
        %v1258 = vand.u32 2147483647, %v1144
        %vm1259 = vcmp.lt.f32.partialorder %v1258, 0.0004427343
        %v1260 = vsel %vm1259, %v1257, %v1254
        %v1261 = vadd.f32 %v1146, 1.0
        %v1262 = vlog2.pop %v1261
        %v1263 = vmul.f32 %v1262, 0.6931472
        %v1264 = vmul.f32 -0.5, %v1146
        %v1265 = vadd.f32 %v1264, 1.0
        %v1266 = vmul.f32 %v1265, %v1146
        %v1267 = vand.u32 2147483647, %v1146
        %vm1268 = vcmp.lt.f32.partialorder %v1267, 0.0004427343
        %v1269 = vsel %vm1268, %v1266, %v1263
        %v1270 = vadd.f32 %v1148, 1.0
        %v1271 = vlog2.pop %v1270
        %v1272 = vmul.f32 %v1271, 0.6931472
        %v1273 = vmul.f32 -0.5, %v1148
        %v1274 = vadd.f32 %v1273, 1.0
        %v1275 = vmul.f32 %v1274, %v1148
        %v1276 = vand.u32 2147483647, %v1148
        %vm1277 = vcmp.lt.f32.partialorder %v1276, 0.0004427343
        %v1278 = vsel %vm1277, %v1275, %v1272
        %v1279 = vadd.f32 %v1150, 1.0
        %v1280 = vlog2.pop %v1279
        %v1281 = vmul.f32 %v1280, 0.6931472
        %v1282 = vmul.f32 -0.5, %v1150
        %v1283 = vadd.f32 %v1282, 1.0
        %v1284 = vmul.f32 %v1283, %v1150
        %v1285 = vand.u32 2147483647, %v1150
        %vm1286 = vcmp.lt.f32.partialorder %v1285, 0.0004427343
        %v1287 = vsel %vm1286, %v1284, %v1281
        %v1288 = vadd.f32 %v1152, 1.0
        %v1289 = vlog2.pop %v1288
        %v1290 = vmul.f32 %v1289, 0.6931472
        %v1291 = vmul.f32 -0.5, %v1152
        %v1292 = vadd.f32 %v1291, 1.0
        %v1293 = vmul.f32 %v1292, %v1152
        %v1294 = vand.u32 2147483647, %v1152
        %vm1295 = vcmp.lt.f32.partialorder %v1294, 0.0004427343
        %v1296 = vsel %vm1295, %v1293, %v1290
        %v1297 = vadd.f32 %v1041, %v1161
        %v1298 = vadd.f32 %v1042, %v1170
        %v1299 = vadd.f32 %v1043, %v1179
        %v1300 = vadd.f32 %v1044, %v1188
        %v1301 = vadd.f32 %v1045, %v1197
        %v1302 = vadd.f32 %v1046, %v1206
        %v1303 = vadd.f32 %v1047, %v1215
        %v1304 = vadd.f32 %v1048, %v1224
        %v1305 = vadd.f32 %v1049, %v1233
        %v1306 = vadd.f32 %v1050, %v1242
        %v1307 = vadd.f32 %v1051, %v1251
        %v1308 = vadd.f32 %v1052, %v1260
        %v1309 = vadd.f32 %v1053, %v1269
        %v1310 = vadd.f32 %v1054, %v1278
        %v1311 = vadd.f32 %v1055, %v1287
        %v1312 = vadd.f32 %v1056, %v1296
        %v1313 = vsel %vm1057, %v1073, %v1297
        %v1314 = vsel %vm1058, %v1074, %v1298
        %v1315 = vsel %vm1059, %v1075, %v1299
        %v1316 = vsel %vm1060, %v1076, %v1300
        %v1317 = vsel %vm1061, %v1077, %v1301
        %v1318 = vsel %vm1062, %v1078, %v1302
        %v1319 = vsel %vm1063, %v1079, %v1303
        %v1320 = vsel %vm1064, %v1080, %v1304
        %v1321 = vsel %vm1065, %v1081, %v1305
        %v1322 = vsel %vm1066, %v1082, %v1306
        %v1323 = vsel %vm1067, %v1083, %v1307
        %v1324 = vsel %vm1068, %v1084, %v1308
        %v1325 = vsel %vm1069, %v1085, %v1309
        %v1326 = vsel %vm1070, %v1086, %v1310
        %v1327 = vsel %vm1071, %v1087, %v1311
        %v1328 = vsel %vm1072, %v1088, %v1312
        %v1329 = vsub.f32 %v1313, 0.6931472
        %v1330 = vsub.f32 %v1314, 0.6931472
        %v1331 = vsub.f32 %v1315, 0.6931472
        %v1332 = vsub.f32 %v1316, 0.6931472
        %v1333 = vsub.f32 %v1317, 0.6931472
        %v1334 = vsub.f32 %v1318, 0.6931472
        %v1335 = vsub.f32 %v1319, 0.6931472
        %v1336 = vsub.f32 %v1320, 0.6931472
        %v1337 = vsub.f32 %v1321, 0.6931472
        %v1338 = vsub.f32 %v1322, 0.6931472
        %v1339 = vsub.f32 %v1323, 0.6931472
        %v1340 = vsub.f32 %v1324, 0.6931472
        %v1341 = vsub.f32 %v1325, 0.6931472
        %v1342 = vsub.f32 %v1326, 0.6931472
        %v1343 = vsub.f32 %v1327, 0.6931472
        %v1344 = vsub.f32 %v1328, 0.6931472
        %v1345 = vpack.c.bf16 %v1330, %v1329
        %v1346 = vpack.c.bf16 %v1332, %v1331
        %v1347 = vpack.c.bf16 %v1334, %v1333
        %v1348 = vpack.c.bf16 %v1336, %v1335
        %v1349 = vpack.c.bf16 %v1338, %v1337
        %v1350 = vpack.c.bf16 %v1340, %v1339
        %v1351 = vpack.c.bf16 %v1342, %v1341
        %v1352 = vpack.c.bf16 %v1344, %v1343
        %v1354 = vlaneseq
        %v1355 = vshrl.u32 %v1354, 7
        %v1356 = vsub.s32 0, %v1355
        %v1357 = vrot.slane %v895, %v1356
        %1359 = vmatprep.subr.bf16.mxu0 0
        %1360 = vmatpush1.bf16.msra.mxu0 %v814
        %1361 = vmatprep.subr.bf16.mxu0 0
        %1362 = vmatpush1.bf16.msra.mxu0 %v815
        %1363 = vmatprep.subr.bf16.mxu0 0
        %1364 = vmatpush1.bf16.msra.mxu0 %v816
        %1365 = vmatprep.subr.bf16.mxu0 0
        %1366 = vmatpush1.bf16.msra.mxu0 %v817
        %1367 = vmatprep.subr.bf16.mxu0 0
        %1368 = vmatpush1.bf16.msra.mxu0 %v818
        %1369 = vmatprep.subr.bf16.mxu0 0
        %1370 = vmatpush1.bf16.msra.mxu0 %v819
        %1371 = vmatprep.subr.bf16.mxu0 0
        %1372 = vmatpush1.bf16.msra.mxu0 %v820
        %1373 = vmatprep.subr.bf16.mxu0 0
        %1374 = vmatpush1.bf16.msra.mxu0 %v821
        %1375 = vmatprep.subr.bf16.mxu0 0
        %1376 = vmatpush1.bf16.msra.mxu0 0
        %1377 = vmatprep.subr.bf16.mxu0 0
        %1378 = vmatpush1.bf16.msra.mxu0 0
        %1379 = vmatprep.subr.bf16.mxu0 0
        %1380 = vmatpush1.bf16.msra.mxu0 0
        %1381 = vmatprep.subr.bf16.mxu0 0
        %1382 = vmatpush1.bf16.msra.mxu0 0
        %1383 = vmatprep.subr.bf16.mxu0 0
        %1384 = vmatpush1.bf16.msra.mxu0 0
        %1385 = vmatprep.subr.bf16.mxu0 0
        %1386 = vmatpush1.bf16.msra.mxu0 0
        %1387 = vmatprep.subr.bf16.mxu0 0
        %1388 = vmatpush1.bf16.msra.mxu0 0
        %1389 = vmatprep.subr.bf16.mxu0 0
        %1390 = vmatpush1.bf16.msra.mxu0 0
        %1391 = vmatprep.mubr.bf16.mxu0 0
        %1392 = vmatmul.mubr.bf16.gmra.mrb[0].mxu0 %v1345
        %v1393 = vpop.f32.mrb[0].mxu0
        %v1394 = vadd.f32 %v1357, %v1393
        %v1395 = vpop.f32.mrb[0].mxu0
        %v1396 = vpop.f32.mrb[0].mxu0
        %v1397 = vadd.f32 %v1357, %v1396
        %v1398 = vpop.f32.mrb[0].mxu0
        %1399 = vmatprep.mubr.bf16.mxu0 0
        %1400 = vmatmul.mubr.bf16.gmra.mrb[0].mxu0 %v1346
        %v1401 = vpop.f32.mrb[0].mxu0
        %v1402 = vadd.f32 %v1357, %v1401
        %v1403 = vpop.f32.mrb[0].mxu0
        %v1404 = vpop.f32.mrb[0].mxu0
        %v1405 = vadd.f32 %v1357, %v1404
        %v1406 = vpop.f32.mrb[0].mxu0
        %1407 = vmatprep.mubr.bf16.mxu0 0
        %1408 = vmatmul.mubr.bf16.gmra.mrb[0].mxu0 %v1347
        %v1409 = vpop.f32.mrb[0].mxu0
        %v1410 = vadd.f32 %v1357, %v1409
        %v1411 = vpop.f32.mrb[0].mxu0
        %v1412 = vpop.f32.mrb[0].mxu0
        %v1413 = vadd.f32 %v1357, %v1412
        %v1414 = vpop.f32.mrb[0].mxu0
        %1415 = vmatprep.mubr.bf16.mxu0 0
        %1416 = vmatmul.mubr.bf16.gmra.mrb[0].mxu0 %v1348
        %v1417 = vpop.f32.mrb[0].mxu0
        %v1418 = vadd.f32 %v1357, %v1417
        %v1419 = vpop.f32.mrb[0].mxu0
        %v1420 = vpop.f32.mrb[0].mxu0
        %v1421 = vadd.f32 %v1357, %v1420
        %v1422 = vpop.f32.mrb[0].mxu0
        %1423 = vmatprep.mubr.bf16.mxu0 0
        %1424 = vmatmul.mubr.bf16.gmra.mrb[0].mxu0 %v1349
        %v1425 = vpop.f32.mrb[0].mxu0
        %v1426 = vadd.f32 %v1357, %v1425
        %v1427 = vpop.f32.mrb[0].mxu0
        %v1428 = vpop.f32.mrb[0].mxu0
        %v1429 = vadd.f32 %v1357, %v1428
        %v1430 = vpop.f32.mrb[0].mxu0
        %1431 = vmatprep.mubr.bf16.mxu0 0
        %1432 = vmatmul.mubr.bf16.gmra.mrb[0].mxu0 %v1350
        %v1433 = vpop.f32.mrb[0].mxu0
        %v1434 = vadd.f32 %v1357, %v1433
        %v1435 = vpop.f32.mrb[0].mxu0
        %v1436 = vpop.f32.mrb[0].mxu0
        %v1437 = vadd.f32 %v1357, %v1436
        %v1438 = vpop.f32.mrb[0].mxu0
        %1439 = vmatprep.mubr.bf16.mxu0 0
        %1440 = vmatmul.mubr.bf16.gmra.mrb[0].mxu0 %v1351
        %v1441 = vpop.f32.mrb[0].mxu0
        %v1442 = vadd.f32 %v1357, %v1441
        %v1443 = vpop.f32.mrb[0].mxu0
        %v1444 = vpop.f32.mrb[0].mxu0
        %v1445 = vadd.f32 %v1357, %v1444
        %v1446 = vpop.f32.mrb[0].mxu0
        %1447 = vmatprep.mubr.bf16.mxu0 0
        %1448 = vmatmul.mubr.bf16.gmra.mrb[0].mxu0 %v1352
        %v1449 = vpop.f32.mrb[0].mxu0
        %v1450 = vadd.f32 %v1357, %v1449
        %v1451 = vpop.f32.mrb[0].mxu0
        %v1452 = vpop.f32.mrb[0].mxu0
        %v1453 = vadd.f32 %v1357, %v1452
        %v1454 = vpop.f32.mrb[0].mxu0
        %1455 = vdwg.mxu0
        %v1456 = vpack.c.bf16 %v743, %v742
        %1457 = vmatprep.subr.bf16.mxu0 0
        %1458 = vmatpush1.bf16.msra.mxu0 %v838
        %1459 = vmatprep.subr.bf16.mxu0 0
        %1460 = vmatpush1.bf16.msra.mxu0 %v839
        %1461 = vmatprep.subr.bf16.mxu0 0
        %1462 = vmatpush1.bf16.msra.mxu0 %v840
        %1463 = vmatprep.subr.bf16.mxu0 0
        %1464 = vmatpush1.bf16.msra.mxu0 %v841
        %1465 = vmatprep.subr.bf16.mxu0 0
        %1466 = vmatpush1.bf16.msra.mxu0 %v842
        %1467 = vmatprep.subr.bf16.mxu0 0
        %1468 = vmatpush1.bf16.msra.mxu0 %v843
        %1469 = vmatprep.subr.bf16.mxu0 0
        %1470 = vmatpush1.bf16.msra.mxu0 %v844
        %1471 = vmatprep.subr.bf16.mxu0 0
        %1472 = vmatpush1.bf16.msra.mxu0 %v845
        %1473 = vmatprep.subr.bf16.mxu0 0
        %1474 = vmatpush1.bf16.msra.mxu0 0
        %1475 = vmatprep.subr.bf16.mxu0 0
        %1476 = vmatpush1.bf16.msra.mxu0 0
        %1477 = vmatprep.subr.bf16.mxu0 0
        %1478 = vmatpush1.bf16.msra.mxu0 0
        %1479 = vmatprep.subr.bf16.mxu0 0
        %1480 = vmatpush1.bf16.msra.mxu0 0
        %1481 = vmatprep.subr.bf16.mxu0 0
        %1482 = vmatpush1.bf16.msra.mxu0 0
        %1483 = vmatprep.subr.bf16.mxu0 0
        %1484 = vmatpush1.bf16.msra.mxu0 0
        %1485 = vmatprep.subr.bf16.mxu0 0
        %1486 = vmatpush1.bf16.msra.mxu0 0
        %1487 = vmatprep.subr.bf16.mxu0 0
        %1488 = vmatpush1.bf16.msra.mxu0 0
        %1489 = vmatprep.mubr.bf16.mxu0 0
        %1490 = vmatmul.mubr.bf16.gmra.mrb[0].mxu0 %v1456
        %v1491 = vpop.f32.mrb[0].mxu0
        %v1492 = vadd.f32 0.0, %v1491
        %v1493 = vpop.f32.mrb[0].mxu0
        %v1494 = vpop.f32.mrb[0].mxu0
        %v1495 = vadd.f32 0.0, %v1494
        %v1496 = vpop.f32.mrb[0].mxu0
        %1497 = vdwg.mxu0
        %v1498 = vlaneseq
        %v1499 = vand.u32 %v1498, 127
        %1500 = vset.pattern.permute.xlu0 0
        %1501 = vperm.xlu0 %1500, %v776
        %v1502 = vpop.permute.xlu0 %1501
        %1503 = vset.pattern.permute.xlu0 0
        %1504 = vperm.xlu0 %1503, %v777
        %v1505 = vpop.permute.xlu0 %1504
        %1506 = vset.pattern.permute.xlu0 0
        %1507 = vperm.xlu0 %1506, %v778
        %v1508 = vpop.permute.xlu0 %1507
        %1509 = vset.pattern.permute.xlu0 0
        %1510 = vperm.xlu0 %1509, %v779
        %v1511 = vpop.permute.xlu0 %1510
        %1512 = vset.pattern.permute.xlu0 0
        %1513 = vperm.xlu0 %1512, %v780
        %v1514 = vpop.permute.xlu0 %1513
        %1515 = vset.pattern.permute.xlu0 0
        %1516 = vperm.xlu0 %1515, %v781
        %v1517 = vpop.permute.xlu0 %1516
        %1518 = vset.pattern.permute.xlu0 0
        %1519 = vperm.xlu0 %1518, %v782
        %v1520 = vpop.permute.xlu0 %1519
        %1521 = vset.pattern.permute.xlu0 0
        %1522 = vperm.xlu0 %1521, %v783
        %v1523 = vpop.permute.xlu0 %1522
        %1524 = vset.pattern.permute.xlu0 0
        %1525 = vperm.xlu0 %1524, %v784
        %v1526 = vpop.permute.xlu0 %1525
        %1527 = vset.pattern.permute.xlu0 0
        %1528 = vperm.xlu0 %1527, %v785
        %v1529 = vpop.permute.xlu0 %1528
        %1530 = vset.pattern.permute.xlu0 0
        %1531 = vperm.xlu0 %1530, %v786
        %v1532 = vpop.permute.xlu0 %1531
        %1533 = vset.pattern.permute.xlu0 0
        %1534 = vperm.xlu0 %1533, %v787
        %v1535 = vpop.permute.xlu0 %1534
        %1536 = vset.pattern.permute.xlu0 0
        %1537 = vperm.xlu0 %1536, %v788
        %v1538 = vpop.permute.xlu0 %1537
        %1539 = vset.pattern.permute.xlu0 0
        %1540 = vperm.xlu0 %1539, %v789
        %v1541 = vpop.permute.xlu0 %1540
        %1542 = vset.pattern.permute.xlu0 0
        %1543 = vperm.xlu0 %1542, %v790
        %v1544 = vpop.permute.xlu0 %1543
        %1545 = vset.pattern.permute.xlu0 0
        %1546 = vperm.xlu0 %1545, %v791
        %v1547 = vpop.permute.xlu0 %1546
        %vm1548 = vcmp.eq.s32.totalorder %v1502, %v1499
        %vm1549 = vcmp.eq.s32.totalorder %v1505, %v1499
        %vm1550 = vcmp.eq.s32.totalorder %v1508, %v1499
        %vm1551 = vcmp.eq.s32.totalorder %v1511, %v1499
        %vm1552 = vcmp.eq.s32.totalorder %v1514, %v1499
        %vm1553 = vcmp.eq.s32.totalorder %v1517, %v1499
        %vm1554 = vcmp.eq.s32.totalorder %v1520, %v1499
        %vm1555 = vcmp.eq.s32.totalorder %v1523, %v1499
        %vm1556 = vcmp.eq.s32.totalorder %v1526, %v1499
        %vm1557 = vcmp.eq.s32.totalorder %v1529, %v1499
        %vm1558 = vcmp.eq.s32.totalorder %v1532, %v1499
        %vm1559 = vcmp.eq.s32.totalorder %v1535, %v1499
        %vm1560 = vcmp.eq.s32.totalorder %v1538, %v1499
        %vm1561 = vcmp.eq.s32.totalorder %v1541, %v1499
        %vm1562 = vcmp.eq.s32.totalorder %v1544, %v1499
        %vm1563 = vcmp.eq.s32.totalorder %v1547, %v1499
        %v1564 = vsel %vm1548, 1, 0
        %v1565 = vsel %vm1549, 1, 0
        %v1566 = vsel %vm1550, 1, 0
        %v1567 = vsel %vm1551, 1, 0
        %v1568 = vsel %vm1552, 1, 0
        %v1569 = vsel %vm1553, 1, 0
        %v1570 = vsel %vm1554, 1, 0
        %v1571 = vsel %vm1555, 1, 0
        %v1572 = vsel %vm1556, 1, 0
        %v1573 = vsel %vm1557, 1, 0
        %v1574 = vsel %vm1558, 1, 0
        %v1575 = vsel %vm1559, 1, 0
        %v1576 = vsel %vm1560, 1, 0
        %v1577 = vsel %vm1561, 1, 0
        %v1578 = vsel %vm1562, 1, 0
        %v1579 = vsel %vm1563, 1, 0
        %v1580 = vcvt.s32.f32 %v1564
        %v1581 = vcvt.s32.f32 %v1565
        %v1582 = vcvt.s32.f32 %v1566
        %v1583 = vcvt.s32.f32 %v1567
        %v1584 = vcvt.s32.f32 %v1568
        %v1585 = vcvt.s32.f32 %v1569
        %v1586 = vcvt.s32.f32 %v1570
        %v1587 = vcvt.s32.f32 %v1571
        %v1588 = vcvt.s32.f32 %v1572
        %v1589 = vcvt.s32.f32 %v1573
        %v1590 = vcvt.s32.f32 %v1574
        %v1591 = vcvt.s32.f32 %v1575
        %v1592 = vcvt.s32.f32 %v1576
        %v1593 = vcvt.s32.f32 %v1577
        %v1594 = vcvt.s32.f32 %v1578
        %v1595 = vcvt.s32.f32 %v1579
        %v1596 = vpack.c.bf16 %v1581, %v1580
        %v1597 = vpack.c.bf16 %v1583, %v1582
        %v1598 = vpack.c.bf16 %v1585, %v1584
        %v1599 = vpack.c.bf16 %v1587, %v1586
        %v1600 = vpack.c.bf16 %v1589, %v1588
        %v1601 = vpack.c.bf16 %v1591, %v1590
        %v1602 = vpack.c.bf16 %v1593, %v1592
        %v1603 = vpack.c.bf16 %v1595, %v1594
        %v1604 = vpack.c.bf16 %v1495, %v1492
        %vm1605 = vcmask 130048
        %v1607 = vsel %vm1605, %v1596, 0
        %v1610 = vsel %vm1605, %v1597, 0
        %v1613 = vsel %vm1605, %v1598, 0
        %v1616 = vsel %vm1605, %v1599, 0
        %v1619 = vsel %vm1605, %v1600, 0
        %v1622 = vsel %vm1605, %v1601, 0
        %v1625 = vsel %vm1605, %v1602, 0
        %v1628 = vsel %vm1605, %v1603, 0
        %1630 = vmatprep.subr.bf16.mxu0 0
        %1631 = vmatpush1.bf16.msra.mxu0 %v1604
        %1632 = vmatprep.subr.bf16.mxu0 0
        %1633 = vmatpush1.bf16.msra.mxu0 0
        %1634 = vmatprep.subr.bf16.mxu0 0
        %1635 = vmatpush1.bf16.msra.mxu0 0
        %1636 = vmatprep.subr.bf16.mxu0 0
        %1637 = vmatpush1.bf16.msra.mxu0 0
        %1638 = vmatprep.subr.bf16.mxu0 0
        %1639 = vmatpush1.bf16.msra.mxu0 0
        %1640 = vmatprep.subr.bf16.mxu0 0
        %1641 = vmatpush1.bf16.msra.mxu0 0
        %1642 = vmatprep.subr.bf16.mxu0 0
        %1643 = vmatpush1.bf16.msra.mxu0 0
        %1644 = vmatprep.subr.bf16.mxu0 0
        %1645 = vmatpush1.bf16.msra.mxu0 0
        %1646 = vmatprep.subr.bf16.mxu0 0
        %1647 = vmatpush1.bf16.msra.mxu0 0
        %1648 = vmatprep.subr.bf16.mxu0 0
        %1649 = vmatpush1.bf16.msra.mxu0 0
        %1650 = vmatprep.subr.bf16.mxu0 0
        %1651 = vmatpush1.bf16.msra.mxu0 0
        %1652 = vmatprep.subr.bf16.mxu0 0
        %1653 = vmatpush1.bf16.msra.mxu0 0
        %1654 = vmatprep.subr.bf16.mxu0 0
        %1655 = vmatpush1.bf16.msra.mxu0 0
        %1656 = vmatprep.subr.bf16.mxu0 0
        %1657 = vmatpush1.bf16.msra.mxu0 0
        %1658 = vmatprep.subr.bf16.mxu0 0
        %1659 = vmatpush1.bf16.msra.mxu0 0
        %1660 = vmatprep.subr.bf16.mxu0 0
        %1661 = vmatpush1.bf16.msra.mxu0 0
        %1662 = vmatprep.mubr.bf16.mxu0 0
        %1663 = vmatmul.mubr.bf16.gmra.mrb[0].mxu0 %v1607
        %v1664 = vpop.f32.mrb[0].mxu0
        %v1665 = vadd.f32 0.0, %v1664
        %v1666 = vpop.f32.mrb[0].mxu0
        %v1667 = vpop.f32.mrb[0].mxu0
        %v1668 = vadd.f32 0.0, %v1667
        %v1669 = vpop.f32.mrb[0].mxu0
        %1670 = vmatprep.mubr.bf16.mxu0 0
        %1671 = vmatmul.mubr.bf16.gmra.mrb[0].mxu0 %v1610
        %v1672 = vpop.f32.mrb[0].mxu0
        %v1673 = vadd.f32 0.0, %v1672
        %v1674 = vpop.f32.mrb[0].mxu0
        %v1675 = vpop.f32.mrb[0].mxu0
        %v1676 = vadd.f32 0.0, %v1675
        %v1677 = vpop.f32.mrb[0].mxu0
        %1678 = vmatprep.mubr.bf16.mxu0 0
        %1679 = vmatmul.mubr.bf16.gmra.mrb[0].mxu0 %v1613
        %v1680 = vpop.f32.mrb[0].mxu0
        %v1681 = vadd.f32 0.0, %v1680
        %v1682 = vpop.f32.mrb[0].mxu0
        %v1683 = vpop.f32.mrb[0].mxu0
        %v1684 = vadd.f32 0.0, %v1683
        %v1685 = vpop.f32.mrb[0].mxu0
        %1686 = vmatprep.mubr.bf16.mxu0 0
        %1687 = vmatmul.mubr.bf16.gmra.mrb[0].mxu0 %v1616
        %v1688 = vpop.f32.mrb[0].mxu0
        %v1689 = vadd.f32 0.0, %v1688
        %v1690 = vpop.f32.mrb[0].mxu0
        %v1691 = vpop.f32.mrb[0].mxu0
        %v1692 = vadd.f32 0.0, %v1691
        %v1693 = vpop.f32.mrb[0].mxu0
        %1694 = vmatprep.mubr.bf16.mxu0 0
        %1695 = vmatmul.mubr.bf16.gmra.mrb[0].mxu0 %v1619
        %v1696 = vpop.f32.mrb[0].mxu0
        %v1697 = vadd.f32 0.0, %v1696
        %v1698 = vpop.f32.mrb[0].mxu0
        %v1699 = vpop.f32.mrb[0].mxu0
        %v1700 = vadd.f32 0.0, %v1699
        %v1701 = vpop.f32.mrb[0].mxu0
        %1702 = vmatprep.mubr.bf16.mxu0 0
        %1703 = vmatmul.mubr.bf16.gmra.mrb[0].mxu0 %v1622
        %v1704 = vpop.f32.mrb[0].mxu0
        %v1705 = vadd.f32 0.0, %v1704
        %v1706 = vpop.f32.mrb[0].mxu0
        %v1707 = vpop.f32.mrb[0].mxu0
        %v1708 = vadd.f32 0.0, %v1707
        %v1709 = vpop.f32.mrb[0].mxu0
        %1710 = vmatprep.mubr.bf16.mxu0 0
        %1711 = vmatmul.mubr.bf16.gmra.mrb[0].mxu0 %v1625
        %v1712 = vpop.f32.mrb[0].mxu0
        %v1713 = vadd.f32 0.0, %v1712
        %v1714 = vpop.f32.mrb[0].mxu0
        %v1715 = vpop.f32.mrb[0].mxu0
        %v1716 = vadd.f32 0.0, %v1715
        %v1717 = vpop.f32.mrb[0].mxu0
        %1718 = vmatprep.mubr.bf16.mxu0 0
        %1719 = vmatmul.mubr.bf16.gmra.mrb[0].mxu0 %v1628
        %v1720 = vpop.f32.mrb[0].mxu0
        %v1721 = vadd.f32 0.0, %v1720
        %v1722 = vpop.f32.mrb[0].mxu0
        %v1723 = vpop.f32.mrb[0].mxu0
        %v1724 = vadd.f32 0.0, %v1723
        %v1725 = vpop.f32.mrb[0].mxu0
        %1726 = vdwg.mxu0
        %1728 = vset.pattern.permute.xlu0 0
        %1729 = vperm.xlu0 %1728, %v760
        %v1730 = vpop.permute.xlu0 %1729
        %1733 = vset.pattern.permute.xlu0 0
        %1734 = vperm.xlu0 %1733, %v761
        %v1735 = vpop.permute.xlu0 %1734
        %1738 = vset.pattern.permute.xlu0 0
        %1739 = vperm.xlu0 %1738, %v762
        %v1740 = vpop.permute.xlu0 %1739
        %1743 = vset.pattern.permute.xlu0 0
        %1744 = vperm.xlu0 %1743, %v763
        %v1745 = vpop.permute.xlu0 %1744
        %1748 = vset.pattern.permute.xlu0 0
        %1749 = vperm.xlu0 %1748, %v764
        %v1750 = vpop.permute.xlu0 %1749
        %1753 = vset.pattern.permute.xlu0 0
        %1754 = vperm.xlu0 %1753, %v765
        %v1755 = vpop.permute.xlu0 %1754
        %1758 = vset.pattern.permute.xlu0 0
        %1759 = vperm.xlu0 %1758, %v766
        %v1760 = vpop.permute.xlu0 %1759
        %1763 = vset.pattern.permute.xlu0 0
        %1764 = vperm.xlu0 %1763, %v767
        %v1765 = vpop.permute.xlu0 %1764
        %1768 = vset.pattern.permute.xlu0 0
        %1769 = vperm.xlu0 %1768, %v768
        %v1770 = vpop.permute.xlu0 %1769
        %1773 = vset.pattern.permute.xlu0 0
        %1774 = vperm.xlu0 %1773, %v769
        %v1775 = vpop.permute.xlu0 %1774
        %1778 = vset.pattern.permute.xlu0 0
        %1779 = vperm.xlu0 %1778, %v770
        %v1780 = vpop.permute.xlu0 %1779
        %1783 = vset.pattern.permute.xlu0 0
        %1784 = vperm.xlu0 %1783, %v771
        %v1785 = vpop.permute.xlu0 %1784
        %1788 = vset.pattern.permute.xlu0 0
        %1789 = vperm.xlu0 %1788, %v772
        %v1790 = vpop.permute.xlu0 %1789
        %1793 = vset.pattern.permute.xlu0 0
        %1794 = vperm.xlu0 %1793, %v773
        %v1795 = vpop.permute.xlu0 %1794
        %1798 = vset.pattern.permute.xlu0 0
        %1799 = vperm.xlu0 %1798, %v774
        %v1800 = vpop.permute.xlu0 %1799
        %1803 = vset.pattern.permute.xlu0 0
        %1804 = vperm.xlu0 %1803, %v775
        %v1805 = vpop.permute.xlu0 %1804
        %v1807 = vmul.f32 %v1394, %v1730
        %v1808 = vmul.f32 %v1397, %v1735
        %v1809 = vmul.f32 %v1402, %v1740
        %v1810 = vmul.f32 %v1405, %v1745
        %v1811 = vmul.f32 %v1410, %v1750
        %v1812 = vmul.f32 %v1413, %v1755
        %v1813 = vmul.f32 %v1418, %v1760
        %v1814 = vmul.f32 %v1421, %v1765
        %v1815 = vmul.f32 %v1426, %v1770
        %v1816 = vmul.f32 %v1429, %v1775
        %v1817 = vmul.f32 %v1434, %v1780
        %v1818 = vmul.f32 %v1437, %v1785
        %v1819 = vmul.f32 %v1442, %v1790
        %v1820 = vmul.f32 %v1445, %v1795
        %v1821 = vmul.f32 %v1450, %v1800
        %v1822 = vmul.f32 %v1453, %v1805
        %v1823 = vmul.f32 %v1665, %v1807
        %v1824 = vmul.f32 %v1668, %v1808
        %v1825 = vmul.f32 %v1673, %v1809
        %v1826 = vmul.f32 %v1676, %v1810
        %v1827 = vmul.f32 %v1681, %v1811
        %v1828 = vmul.f32 %v1684, %v1812
        %v1829 = vmul.f32 %v1689, %v1813
        %v1830 = vmul.f32 %v1692, %v1814
        %v1831 = vmul.f32 %v1697, %v1815
        %v1832 = vmul.f32 %v1700, %v1816
        %v1833 = vmul.f32 %v1705, %v1817
        %v1834 = vmul.f32 %v1708, %v1818
        %v1835 = vmul.f32 %v1713, %v1819
        %v1836 = vmul.f32 %v1716, %v1820
        %v1837 = vmul.f32 %v1721, %v1821
        %v1838 = vmul.f32 %v1724, %v1822
        %v1839 = vrot.slane %v1823, 4
        %v1840 = vadd.f32 %v1823, %v1839
        %v1841 = vrot.slane %v1840, 2
        %v1842 = vadd.f32 %v1840, %v1841
        %v1843 = vrot.slane %v1842, 1
        %v1844 = vadd.f32 %v1842, %v1843
        %v1845 = vrot.slane %v1824, 4
        %v1846 = vadd.f32 %v1824, %v1845
        %v1847 = vrot.slane %v1846, 2
        %v1848 = vadd.f32 %v1846, %v1847
        %v1849 = vrot.slane %v1848, 1
        %v1850 = vadd.f32 %v1848, %v1849
        %v1851 = vrot.slane %v1825, 4
        %v1852 = vadd.f32 %v1825, %v1851
        %v1853 = vrot.slane %v1852, 2
        %v1854 = vadd.f32 %v1852, %v1853
        %v1855 = vrot.slane %v1854, 1
        %v1856 = vadd.f32 %v1854, %v1855
        %v1857 = vrot.slane %v1826, 4
        %v1858 = vadd.f32 %v1826, %v1857
        %v1859 = vrot.slane %v1858, 2
        %v1860 = vadd.f32 %v1858, %v1859
        %v1861 = vrot.slane %v1860, 1
        %v1862 = vadd.f32 %v1860, %v1861
        %v1863 = vrot.slane %v1827, 4
        %v1864 = vadd.f32 %v1827, %v1863
        %v1865 = vrot.slane %v1864, 2
        %v1866 = vadd.f32 %v1864, %v1865
        %v1867 = vrot.slane %v1866, 1
        %v1868 = vadd.f32 %v1866, %v1867
        %v1869 = vrot.slane %v1828, 4
        %v1870 = vadd.f32 %v1828, %v1869
        %v1871 = vrot.slane %v1870, 2
        %v1872 = vadd.f32 %v1870, %v1871
        %v1873 = vrot.slane %v1872, 1
        %v1874 = vadd.f32 %v1872, %v1873
        %v1875 = vrot.slane %v1829, 4
        %v1876 = vadd.f32 %v1829, %v1875
        %v1877 = vrot.slane %v1876, 2
        %v1878 = vadd.f32 %v1876, %v1877
        %v1879 = vrot.slane %v1878, 1
        %v1880 = vadd.f32 %v1878, %v1879
        %v1881 = vrot.slane %v1830, 4
        %v1882 = vadd.f32 %v1830, %v1881
        %v1883 = vrot.slane %v1882, 2
        %v1884 = vadd.f32 %v1882, %v1883
        %v1885 = vrot.slane %v1884, 1
        %v1886 = vadd.f32 %v1884, %v1885
        %v1887 = vrot.slane %v1831, 4
        %v1888 = vadd.f32 %v1831, %v1887
        %v1889 = vrot.slane %v1888, 2
        %v1890 = vadd.f32 %v1888, %v1889
        %v1891 = vrot.slane %v1890, 1
        %v1892 = vadd.f32 %v1890, %v1891
        %v1893 = vrot.slane %v1832, 4
        %v1894 = vadd.f32 %v1832, %v1893
        %v1895 = vrot.slane %v1894, 2
        %v1896 = vadd.f32 %v1894, %v1895
        %v1897 = vrot.slane %v1896, 1
        %v1898 = vadd.f32 %v1896, %v1897
        %v1899 = vrot.slane %v1833, 4
        %v1900 = vadd.f32 %v1833, %v1899
        %v1901 = vrot.slane %v1900, 2
        %v1902 = vadd.f32 %v1900, %v1901
        %v1903 = vrot.slane %v1902, 1
        %v1904 = vadd.f32 %v1902, %v1903
        %v1905 = vrot.slane %v1834, 4
        %v1906 = vadd.f32 %v1834, %v1905
        %v1907 = vrot.slane %v1906, 2
        %v1908 = vadd.f32 %v1906, %v1907
        %v1909 = vrot.slane %v1908, 1
        %v1910 = vadd.f32 %v1908, %v1909
        %v1911 = vrot.slane %v1835, 4
        %v1912 = vadd.f32 %v1835, %v1911
        %v1913 = vrot.slane %v1912, 2
        %v1914 = vadd.f32 %v1912, %v1913
        %v1915 = vrot.slane %v1914, 1
        %v1916 = vadd.f32 %v1914, %v1915
        %v1917 = vrot.slane %v1836, 4
        %v1918 = vadd.f32 %v1836, %v1917
        %v1919 = vrot.slane %v1918, 2
        %v1920 = vadd.f32 %v1918, %v1919
        %v1921 = vrot.slane %v1920, 1
        %v1922 = vadd.f32 %v1920, %v1921
        %v1923 = vrot.slane %v1837, 4
        %v1924 = vadd.f32 %v1837, %v1923
        %v1925 = vrot.slane %v1924, 2
        %v1926 = vadd.f32 %v1924, %v1925
        %v1927 = vrot.slane %v1926, 1
        %v1928 = vadd.f32 %v1926, %v1927
        %v1929 = vrot.slane %v1838, 4
        %v1930 = vadd.f32 %v1838, %v1929
        %v1931 = vrot.slane %v1930, 2
        %v1932 = vadd.f32 %v1930, %v1931
        %v1933 = vrot.slane %v1932, 1
        %v1934 = vadd.f32 %v1932, %v1933
        %v1935 = vpack.c.bf16 %v1844, %v1844
        %v1936 = vpack.c.bf16 %v1850, %v1850
        %v1937 = vpack.c.bf16 %v1856, %v1856
        %v1938 = vpack.c.bf16 %v1862, %v1862
        %v1939 = vpack.c.bf16 %v1868, %v1868
        %v1940 = vpack.c.bf16 %v1874, %v1874
        %v1941 = vpack.c.bf16 %v1880, %v1880
        %v1942 = vpack.c.bf16 %v1886, %v1886
        %v1943 = vpack.c.bf16 %v1892, %v1892
        %v1944 = vpack.c.bf16 %v1898, %v1898
        %v1945 = vpack.c.bf16 %v1904, %v1904
        %v1946 = vpack.c.bf16 %v1910, %v1910
        %v1947 = vpack.c.bf16 %v1916, %v1916
        %v1948 = vpack.c.bf16 %v1922, %v1922
        %v1949 = vpack.c.bf16 %v1928, %v1928
        %v1950 = vpack.c.bf16 %v1934, %v1934
        %v1952 = vlaneseq
        %v1953 = vshrl.u32 %v1952, 7
        %v1954 = vsub.s32 0, %v1953
        %v1955 = vrot.slane %v896, %v1954
        %v1973 = vunpack.c.l.b16 %v1935
        %v1974 = vunpack.c.l.b16 %v1936
        %v1975 = vunpack.c.l.b16 %v1937
        %v1976 = vunpack.c.l.b16 %v1938
        %v1977 = vunpack.c.l.b16 %v1939
        %v1978 = vunpack.c.l.b16 %v1940
        %v1979 = vunpack.c.l.b16 %v1941
        %v1980 = vunpack.c.l.b16 %v1942
        %v1981 = vunpack.c.l.b16 %v1943
        %v1982 = vunpack.c.l.b16 %v1944
        %v1983 = vunpack.c.l.b16 %v1945
        %v1984 = vunpack.c.l.b16 %v1946
        %v1985 = vunpack.c.l.b16 %v1947
        %v1986 = vunpack.c.l.b16 %v1948
        %v1987 = vunpack.c.l.b16 %v1949
        %v1988 = vunpack.c.l.b16 %v1950
        %vm1989 = vcmask 1041409
        %v1990 = vsel %vm1989, %v1974, %v1973
        %vm1991 = vcmask 1042434
        %v1992 = vsel %vm1991, %v1975, %v1990
        %vm1993 = vcmask 1043459
        %v1994 = vsel %vm1993, %v1976, %v1992
        %vm1995 = vcmask 1044484
        %v1996 = vsel %vm1995, %v1977, %v1994
        %vm1997 = vcmask 1045509
        %v1998 = vsel %vm1997, %v1978, %v1996
        %vm1999 = vcmask 1046534
        %v2000 = vsel %vm1999, %v1979, %v1998
        %vm2001 = vcmask 1047559
        %v2002 = vsel %vm2001, %v1980, %v2000
        %v2003 = vsel %vm1989, %v1982, %v1981
        %v2004 = vsel %vm1991, %v1983, %v2003
        %v2005 = vsel %vm1993, %v1984, %v2004
        %v2006 = vsel %vm1995, %v1985, %v2005
        %v2007 = vsel %vm1997, %v1986, %v2006
        %v2008 = vsel %vm1999, %v1987, %v2007
        %v2009 = vsel %vm2001, %v1988, %v2008
        %v2010 = vpack.c.b16 %v2009, %v2002
        %2012 = vmatprep.subr.bf16.mxu0 0
        %2013 = vmatpush1.bf16.msra.mxu0 %v862
        %2014 = vmatprep.subr.bf16.mxu0 0
        %2015 = vmatpush1.bf16.msra.mxu0 %v863
        %2016 = vmatprep.subr.bf16.mxu0 0
        %2017 = vmatpush1.bf16.msra.mxu0 %v864
        %2018 = vmatprep.subr.bf16.mxu0 0
        %2019 = vmatpush1.bf16.msra.mxu0 %v865
        %2020 = vmatprep.subr.bf16.mxu0 0
        %2021 = vmatpush1.bf16.msra.mxu0 %v866
        %2022 = vmatprep.subr.bf16.mxu0 0
        %2023 = vmatpush1.bf16.msra.mxu0 %v867
        %2024 = vmatprep.subr.bf16.mxu0 0
        %2025 = vmatpush1.bf16.msra.mxu0 %v868
        %2026 = vmatprep.subr.bf16.mxu0 0
        %2027 = vmatpush1.bf16.msra.mxu0 %v869
        %2028 = vmatprep.subr.bf16.mxu0 0
        %2029 = vmatpush1.bf16.msra.mxu0 0
        %2030 = vmatprep.subr.bf16.mxu0 0
        %2031 = vmatpush1.bf16.msra.mxu0 0
        %2032 = vmatprep.subr.bf16.mxu0 0
        %2033 = vmatpush1.bf16.msra.mxu0 0
        %2034 = vmatprep.subr.bf16.mxu0 0
        %2035 = vmatpush1.bf16.msra.mxu0 0
        %2036 = vmatprep.subr.bf16.mxu0 0
        %2037 = vmatpush1.bf16.msra.mxu0 0
        %2038 = vmatprep.subr.bf16.mxu0 0
        %2039 = vmatpush1.bf16.msra.mxu0 0
        %2040 = vmatprep.subr.bf16.mxu0 0
        %2041 = vmatpush1.bf16.msra.mxu0 0
        %2042 = vmatprep.subr.bf16.mxu0 0
        %2043 = vmatpush1.bf16.msra.mxu0 0
        %2044 = vmatprep.mubr.bf16.mxu0 0
        %2045 = vmatmul.mubr.bf16.gmra.mrb[0].mxu0 %v2010
        %v2046 = vpop.f32.mrb[0].mxu0
        %v2047 = vadd.f32 %v1955, %v2046
        %v2048 = vpop.f32.mrb[0].mxu0
        %v2049 = vpop.f32.mrb[0].mxu0
        %v2050 = vadd.f32 %v1955, %v2049
        %v2051 = vpop.f32.mrb[0].mxu0
        %2052 = vdwg.mxu0
        %v2053 = vmax.f32 %v2047, 0.0
        %v2054 = vmax.f32 %v2050, 0.0
        %vm2055 = vcmp.ne.f32.partialorder %v2047, %v2047
        %vm2056 = vcmp.ne.f32.partialorder %v2050, %v2050
        %v2057 = vadd.f32 %v2047, 0.0
        %v2058 = vadd.f32 %v2050, 0.0
        %v2059 = vand.u32 2147483647, %v2047
        %v2060 = vand.u32 2147483647, %v2050
        %v2061 = vsub.f32 0.0, %v2059
        %v2062 = vsub.f32 0.0, %v2060
        %v2063 = vmul.f32 %v2061, 1.442695
        %v2064 = vpow.pop %v2063
        %v2065 = vmul.f32 %v2062, 1.442695
        %v2066 = vpow.pop %v2065
        %v2067 = vadd.f32 %v2064, 1.0
        %v2068 = vlog2.pop %v2067
        %v2069 = vmul.f32 %v2068, 0.6931472
        %v2070 = vmul.f32 -0.5, %v2064
        %v2071 = vadd.f32 %v2070, 1.0
        %v2072 = vmul.f32 %v2071, %v2064
        %v2073 = vand.u32 2147483647, %v2064
        %vm2074 = vcmp.lt.f32.partialorder %v2073, 0.0004427343
        %v2075 = vsel %vm2074, %v2072, %v2069
        %v2076 = vadd.f32 %v2066, 1.0
        %v2077 = vlog2.pop %v2076
        %v2078 = vmul.f32 %v2077, 0.6931472
        %v2079 = vmul.f32 -0.5, %v2066
        %v2080 = vadd.f32 %v2079, 1.0
        %v2081 = vmul.f32 %v2080, %v2066
        %v2082 = vand.u32 2147483647, %v2066
        %vm2083 = vcmp.lt.f32.partialorder %v2082, 0.0004427343
        %v2084 = vsel %vm2083, %v2081, %v2078
        %v2085 = vadd.f32 %v2053, %v2075
        %v2086 = vadd.f32 %v2054, %v2084
        %v2087 = vsel %vm2055, %v2057, %v2085
        %v2088 = vsel %vm2056, %v2058, %v2086
        %v2089 = vsub.f32 %v2087, 0.6931472
        %v2090 = vsub.f32 %v2088, 0.6931472
        %v2091 = vpack.c.bf16 %v2090, %v2089
        %v2093 = vlaneseq
        %v2094 = vshrl.u32 %v2093, 7
        %v2095 = vsub.s32 0, %v2094
        %v2096 = vrot.slane %v897, %v2095
        %2098 = vmatprep.subr.bf16.mxu0 0
        %2099 = vmatpush1.bf16.msra.mxu0 %v886
        %2100 = vmatprep.subr.bf16.mxu0 0
        %2101 = vmatpush1.bf16.msra.mxu0 %v887
        %2102 = vmatprep.subr.bf16.mxu0 0
        %2103 = vmatpush1.bf16.msra.mxu0 %v888
        %2104 = vmatprep.subr.bf16.mxu0 0
        %2105 = vmatpush1.bf16.msra.mxu0 %v889
        %2106 = vmatprep.subr.bf16.mxu0 0
        %2107 = vmatpush1.bf16.msra.mxu0 %v890
        %2108 = vmatprep.subr.bf16.mxu0 0
        %2109 = vmatpush1.bf16.msra.mxu0 %v891
        %2110 = vmatprep.subr.bf16.mxu0 0
        %2111 = vmatpush1.bf16.msra.mxu0 %v892
        %2112 = vmatprep.subr.bf16.mxu0 0
        %2113 = vmatpush1.bf16.msra.mxu0 %v893
        %2114 = vmatprep.subr.bf16.mxu0 0
        %2115 = vmatpush1.bf16.msra.mxu0 0
        %2116 = vmatprep.subr.bf16.mxu0 0
        %2117 = vmatpush1.bf16.msra.mxu0 0
        %2118 = vmatprep.subr.bf16.mxu0 0
        %2119 = vmatpush1.bf16.msra.mxu0 0
        %2120 = vmatprep.subr.bf16.mxu0 0
        %2121 = vmatpush1.bf16.msra.mxu0 0
        %2122 = vmatprep.subr.bf16.mxu0 0
        %2123 = vmatpush1.bf16.msra.mxu0 0
        %2124 = vmatprep.subr.bf16.mxu0 0
        %2125 = vmatpush1.bf16.msra.mxu0 0
        %2126 = vmatprep.subr.bf16.mxu0 0
        %2127 = vmatpush1.bf16.msra.mxu0 0
        %2128 = vmatprep.subr.bf16.mxu0 0
        %2129 = vmatpush1.bf16.msra.mxu0 0
        %2130 = vmatprep.mubr.bf16.mxu0 0
        %2131 = vmatmul.mubr.bf16.gmra.mrb[0].mxu0 %v2091
        %v2132 = vpop.f32.mrb[0].mxu0
        %v2133 = vadd.f32 %v2096, %v2132
        %v2134 = vpop.f32.mrb[0].mxu0
        %v2135 = vpop.f32.mrb[0].mxu0
        %v2136 = vadd.f32 %v2096, %v2135
        %v2137 = vpop.f32.mrb[0].mxu0
        %2138 = vdwg.mxu0
        %v2139 = vadd.f32 %v742, %v2133
        %v2140 = vadd.f32 %v743, %v2136
        %2141 = vst [vmem:[%s685] sm:$0xff] %v2139
        %2142 = vst [vmem:[%s685 + $0x8] sm:$0xff] %v2140
        %s2143 = sand.u32 %s391, 1
        %s2144 = scalar_lea.sflag [#allocation4], %s2143
        %s2145 = sand.u32 %s391, 1
        %s2146 = smul.addr %s2145, 16
        %s2147 = scalar_lea.vmem [#allocation8], %s2146
        // Predicated region
        $region89: #{tpu_custom_call.1} parent=71 // pred_check
          %p2148 = pneg %p401
        $region90: #{tpu_custom_call.1} parent=71 // pred_check_branch
          %2150 = sbr.rel (%p2148) target = $region92
        $region91: #{tpu_custom_call.1} parent=71 // pred_region
          %s2151 = smul.u32 2, %s37
          %s2153 = ssub.s32 256, 256
          %2154 = vsyncadd %s2144, %s2153
          %s2155 = smul.addr %s2151, 128
          %s2156 = scalar_lea.hbm %s13, %s2155
          %s2157 = sshll.u32 %s2147, 4
          %s2158 = int_to_ptr.vmem [resolvable:$true] %s2157
          %2163 = dma.vmem_to_hbm [thread:$0]  %s2158, 256, %s2156, %s2144, 128, 128, 8
        $region92: #{tpu_custom_call.1} parent=71 // pred_fallthru
          _
      $region72: #{tpu_custom_call.1} parent=5 // pred_fallthru
        _
      %p2164 = scmp.le.s32.totalorder 2, %s28
      // Predicated region
      $region93: #{tpu_custom_call.1} parent=5 // pred_check
        %p2165 = pneg %p2164
      $region94: #{tpu_custom_call.1} parent=5 // pred_check_branch
        %2167 = sbr.rel (%p2165) target = $region96
      $region95: #{tpu_custom_call.1} parent=5 // pred_region
        %s2168 = ssub.s32 %s28, 2
        // Predicated region
        $region97: #{tpu_custom_call.1} parent=95 // pred_check
          %p2169 = pneg %p407
        $region98: #{tpu_custom_call.1} parent=95 // pred_check_branch
          %2171 = sbr.rel (%p2169) target = $region100
        $region99: #{tpu_custom_call.1} parent=95 // pred_region
          %s2172 = sand.u32 %s392, 1
          %s2173 = scalar_lea.sflag [#allocation4], %s2172
          %s2174 = sand.u32 %s392, 1
          %s2175 = smul.addr %s2174, 16
          %s2176 = scalar_lea.vmem [#allocation8], %s2175
          %2177 = dma.done %s2173, 256
        $region100: #{tpu_custom_call.1} parent=95 // pred_fallthru
          _
      $region96: #{tpu_custom_call.1} parent=5 // pred_fallthru
        _
    $region6: #{tpu_custom_call.1} parent=1 // loop_footer
      %s32 = sadd.s32 1, %s28
    $region7: #{tpu_custom_call.1} parent=1 // loop_footer_branch
      %27 = sbr.rel target = $region3
    $region8: #{tpu_custom_call.1} parent=1 // loop_exit
      _
    %2178 = vsyncpa [#allocation3], 1
    %s2179 = scalar_lea.sflag [#allocation3], 1
    %2180 = vsyncpa %s2179, 1
    %2181 = vsyncpa [#allocation6], 1
    %s2182 = scalar_lea.sflag [#allocation6], 1
    %2183 = vsyncpa %s2182, 1
    %2184 = vsyncpa [#allocation4], 1
    %s2185 = scalar_lea.sflag [#allocation4], 1
    %2186 = vsyncpa %s2185, 1

</llo_original>
